<compile_context>
chip_gen: v5e
topology: v5e:2x2
jax: 0.10.0
libtpu: 0.0.40
codegen_flags: <defaults>
</compile_context>

<pallas_src>
import numpy as np

import jax
import jax.numpy as jnp
from jax.experimental import pallas as pl
from jax.experimental.pallas import tpu as pltpu

_LANE = 128   # vreg lane width; every matmul N dim is padded to this
_CPAD = 8     # conv1 input channels padded 4 -> 8 so W*Cpad == 128 lanes


# ----------------------------------------------------------------------------
# Fused forward kernel: conv3x3+ReLU -> conv3x3+ReLU -> fc+ReLU -> fc
# Activation layout: [B, H, W*C] (channels packed along lanes, NHWC order).
# ----------------------------------------------------------------------------
def _fused_kernel(x_ref, w1_ref, b1_ref, w2_ref, b2_ref,
                  wf1_ref, bf1_ref, wf2_ref, bf2_ref, o_ref, lhs_ref):
    B, H, L = x_ref.shape                 # (2, 16, 128); L = W * Cpad
    LF = w1_ref.shape[1]                  # conv output lanes = W * feat = 128

    # lhs_ref: (B, H+2, 3L) f32 scratch shared by both conv layers.
    # Lane-block kh holds the activation shifted so that scratch row s = h+1
    # carries x[h + kh - 1]; the two never-written boundary slices implement
    # the "SAME" zero padding along H and are zeroed exactly once.
    zrow = jnp.zeros((B, 1, L), jnp.float32)
    lhs_ref[:, 1:2, 0:L] = zrow                      # x[h-1] tap at h = 0
    lhs_ref[:, H:H + 1, 2 * L:3 * L] = zrow          # x[h+1] tap at h = H-1

    def conv3x3(act3d, w_ref, b_row):
        # act3d: (B, H, L) f32.  Stage the 3 kh taps side-by-side in lanes
        # (three full-slab stores), then ONE K = 3L matmul on the MXU.
        lhs_ref[:, 2:H + 2, 0:L] = act3d             # kh=0 tap: x[h-1]
        lhs_ref[:, 1:H + 1, L:2 * L] = act3d         # kh=1 tap: x[h]
        lhs_ref[:, 0:H, 2 * L:3 * L] = act3d         # kh=2 tap: x[h+1]
        lhs = lhs_ref[:, 1:H + 1, :].reshape(B * H, 3 * L).astype(jnp.bfloat16)
        y = jnp.dot(lhs, w_ref[...], preferred_element_type=jnp.float32)
        return jnp.maximum(y + b_row, 0.0)           # (B*H, LF) f32

    h1 = conv3x3(x_ref[...], w1_ref, b1_ref[...])
    h2 = conv3x3(h1.reshape(B, H, LF), w2_ref, b2_ref[...])

    # fc1: single long-K matmul (K = H*LF = 2048).  The (B, H*LF) LHS is built
    # by a lane-dim concatenation of the 16 per-row slabs (cheap vreg placement,
    # no sublane->lane reshape).
    h2_3d = h2.astype(jnp.bfloat16).reshape(B, H, LF)
    fc_in = jnp.concatenate([h2_3d[:, h, :] for h in range(H)], axis=1)
    hf = jnp.maximum(
        jnp.dot(fc_in, wf1_ref[...], preferred_element_type=jnp.float32)
        + bf1_ref[...], 0.0)                         # (B, 128) f32

    # fc2 (N padded to 128 lanes; wrapper slices the valid action_dim cols).
    o_ref[...] = jnp.dot(hf.astype(jnp.bfloat16), wf2_ref[...],
                         preferred_element_type=jnp.float32) + bf2_ref[...]


def _vmem_full(shape):
    n = len(shape)
    return pl.BlockSpec(shape, lambda i, n=n: (0,) * n)


@jax.jit
def _fused_forward(x, w1, b1, w2, b2, wf1, bf1, wf2, bf2):
    B, C, H, W = x.shape
    # Layout plumbing (outside the kernel): NCHW -> lane-dense [B, H, W*Cpad]
    # with zero-padded channels so conv1's LHS is a full 128 lanes.
    x_nhwc = jnp.transpose(x, (0, 2, 3, 1))
    x_nhwc = jnp.pad(x_nhwc, ((0, 0), (0, 0), (0, 0), (0, _CPAD - C)))
    x_pk = x_nhwc.reshape(B, H, W * _CPAD).astype(jnp.float32)

    args = (x_pk, w1, b1, w2, b2, wf1, bf1, wf2, bf2)
    return pl.pallas_call(
        _fused_kernel,
        out_shape=jax.ShapeDtypeStruct((B, _LANE), jnp.float32),
        grid=(1,),
        in_specs=[_vmem_full(a.shape) for a in args],
        out_specs=_vmem_full((B, _LANE)),
        scratch_shapes=[pltpu.VMEM((B, H + 2, 3 * W * _CPAD), jnp.float32)],
        compiler_params=pltpu.CompilerParams(
            dimension_semantics=("arbitrary",),
            vmem_limit_bytes=8 * 1024 * 1024),
    )(*args)


# ----------------------------------------------------------------------------
# Weight packing (done ONCE at init — no per-call reshapes)
# ----------------------------------------------------------------------------
def _pack_conv_band(w_oihw, width, cin_pad=None):
    """3x3 conv weight [O,C,3,3] -> kh-fused banded matmul weight
    [3*width*C, width*O]; rows [kh*width*C:(kh+1)*width*C] correspond to the
    x[h+kh-1] lane-block of the staged LHS.  kw taps + W-direction zero padding
    are folded into the band structure."""
    w = np.asarray(w_oihw, np.float32)
    O, C, KH, KW = w.shape
    if cin_pad is not None and cin_pad > C:
        w = np.concatenate(
            [w, np.zeros((O, cin_pad - C, KH, KW), np.float32)], axis=1)
        C = cin_pad
    band = np.zeros((KH, width * C, width * O), np.float32)
    for kh in range(KH):
        for w_out in range(width):
            for kw in range(KW):
                w_in = w_out + kw - 1
                if 0 <= w_in < width:
                    band[kh,
                         w_in * C:(w_in + 1) * C,
                         w_out * O:(w_out + 1) * O] = w[:, :, kh, kw].T
    return jnp.asarray(band.reshape(KH * width * C, width * O), jnp.bfloat16)


def _pack_fc1(fc1_w, feat, H, W, n_pad):
    """fc1 weight [feat*H*W, hidden] (CHW flatten) -> [H*W*feat, n_pad],
    h-major so a single K = H*W*feat dot matches the lane-concatenated LHS."""
    w = np.asarray(fc1_w, np.float32)
    hidden = w.shape[1]
    t = w.reshape(feat, H, W, hidden).transpose(1, 2, 0, 3)   # [h, w, c, n]
    t = t.reshape(H * W * feat, hidden)
    out = np.zeros((H * W * feat, n_pad), np.float32)
    out[:, :hidden] = t
    return jnp.asarray(out, jnp.bfloat16)


def _pad_mat(m, rows, cols):
    mm = np.asarray(m, np.float32)
    out = np.zeros((rows, cols), np.float32)
    out[:mm.shape[0], :mm.shape[1]] = mm
    return jnp.asarray(out, jnp.bfloat16)


def _pad_row(v, lane):
    out = np.zeros((1, lane), np.float32)
    out[0, :np.asarray(v).shape[0]] = np.asarray(v, np.float32)
    return jnp.asarray(out, jnp.float32)


def _tile_row(v, width):
    return jnp.asarray(np.tile(np.asarray(v, np.float32), width)[None, :],
                       jnp.float32)


# ----------------------------------------------------------------------------
# BackwardDynamics model (deterministic synthetic parameters)
# ----------------------------------------------------------------------------
class BackwardDynamics:
    def __init__(self, in_channels=4, hw=16, hidden=32, action_dim=6, seed=0):
        self.in_channels = in_channels
        self.hw = hw
        self.hidden = hidden
        self.action_dim = action_dim
        feat = 8
        self.feat = feat
        assert hw * feat == _LANE and hw * _CPAD == _LANE
        assert in_channels <= _CPAD
        assert hidden <= _LANE and action_dim <= _LANE

        k1, k2, k3, k4 = jax.random.split(jax.random.PRNGKey(seed), 4)
        conv1_w = jax.random.normal(k1, (feat, in_channels, 3, 3),
                                    jnp.float32) * 0.1
        conv1_b = jnp.zeros((feat,), jnp.float32)
        conv2_w = jax.random.normal(k2, (feat, feat, 3, 3), jnp.float32) * 0.1
        conv2_b = jnp.zeros((feat,), jnp.float32)
        flat = feat * hw * hw
        fc1_w = jax.random.normal(k3, (flat, hidden), jnp.float32) \
            * (1.0 / np.sqrt(flat))
        fc1_b = jnp.zeros((hidden,), jnp.float32)
        fc2_w = jax.random.normal(k4, (hidden, action_dim), jnp.float32) \
            * (1.0 / np.sqrt(hidden))
        fc2_b = jnp.zeros((action_dim,), jnp.float32)

        # raw params kept for the pure-JAX reference check
        self.raw = (conv1_w, conv1_b, conv2_w, conv2_b,
                    fc1_w, fc1_b, fc2_w, fc2_b)

        # kernel-ready, lane-dense bf16 layouts (built once)
        self.w1 = _pack_conv_band(conv1_w, hw, cin_pad=_CPAD)  # (384, 128)
        self.b1 = _tile_row(conv1_b, hw)                       # (1, 128) f32
        self.w2 = _pack_conv_band(conv2_w, hw)                 # (384, 128)
        self.b2 = _tile_row(conv2_b, hw)                       # (1, 128) f32
        self.wf1 = _pack_fc1(fc1_w, feat, hw, hw, _LANE)       # (2048, 128)
        self.bf1 = _pad_row(fc1_b, _LANE)                      # (1, 128) f32
        self.wf2 = _pad_mat(fc2_w, _LANE, _LANE)               # (128, 128)
        self.bf2 = _pad_row(fc2_b, _LANE)                      # (1, 128) f32

    def forward(self, x):
        # x: [B, C, H, W] (NCHW) float32
        B, C, H, W = x.shape
        assert (C, H, W) == (self.in_channels, self.hw, self.hw)
        out = _fused_forward(x, self.w1, self.b1, self.w2, self.b2,
                             self.wf1, self.bf1, self.wf2, self.bf2)
        return out[:, :self.action_dim]


# ----------------------------------------------------------------------------
# Pure-JAX f32 reference (same math, unpacked weights) for correctness check
# ----------------------------------------------------------------------------
def _reference_forward(x, raw):
    c1w, c1b, c2w, c2b, f1w, f1b, f2w, f2b = raw
    dn = ("NCHW", "OIHW", "NCHW")
    hi = jax.lax.Precision.HIGHEST
    y = jax.lax.conv_general_dilated(x, c1w, (1, 1), "SAME",
                                     dimension_numbers=dn, precision=hi)
    y = jax.nn.relu(y + c1b[None, :, None, None])
    y = jax.lax.conv_general_dilated(y, c2w, (1, 1), "SAME",
                                     dimension_numbers=dn, precision=hi)
    y = jax.nn.relu(y + c2b[None, :, None, None])
    y = y.reshape(x.shape[0], -1)
    y = jax.nn.relu(jnp.dot(y, f1w, precision=hi) + f1b)
    return jnp.dot(y, f2w, precision=hi) + f2b


if __name__ == "__main__":
    key = jax.random.PRNGKey(0)
    x = jax.random.normal(key, (2, 4, 16, 16), jnp.float32)

    model = BackwardDynamics(in_channels=4, hw=16, hidden=32, action_dim=6,
                             seed=0)
    out = jax.block_until_ready(model.forward(x))
    assert out.shape == (2, 6) and out.dtype == jnp.float32

    ref = jax.block_until_ready(_reference_forward(x, model.raw))
    assert jnp.allclose(out, ref, rtol=5e-2, atol=5e-2), (out, ref)

    print("KERNEL_OK")
</pallas_src>

<mosaic_0001>
module attributes {stable_mosaic.version = 11 : i64} {
  func.func @_fused_kernel(%arg0: i32, %arg1: memref<2x16x128xf32, #tpu.memory_space<vmem>>, %arg2: memref<384x128xbf16, #tpu.memory_space<vmem>>, %arg3: memref<1x128xf32, #tpu.memory_space<vmem>>, %arg4: memref<384x128xbf16, #tpu.memory_space<vmem>>, %arg5: memref<1x128xf32, #tpu.memory_space<vmem>>, %arg6: memref<2048x128xbf16, #tpu.memory_space<vmem>>, %arg7: memref<1x128xf32, #tpu.memory_space<vmem>>, %arg8: memref<128x128xbf16, #tpu.memory_space<vmem>>, %arg9: memref<1x128xf32, #tpu.memory_space<vmem>>, %arg10: memref<2x128xf32, #tpu.memory_space<vmem>>, %arg11: memref<2x18x384xf32, #tpu.memory_space<vmem>>) attributes {dimension_semantics = [#tpu.dimension_semantics<arbitrary>], iteration_bounds = array<i64: 1>, scalar_prefetch = 0 : i64, scratch_operands = 1 : i64, tpu.core_type = #tpu.core_type<tc>, window_params = [{pipeline_mode = #tpu.pipeline_mode<synchronous>, transform_indices = @transform_0, window_bounds = array<i64: 2, 16, 128>}, {pipeline_mode = #tpu.pipeline_mode<synchronous>, transform_indices = @transform_1, window_bounds = array<i64: 384, 128>}, {pipeline_mode = #tpu.pipeline_mode<synchronous>, transform_indices = @transform_2, window_bounds = array<i64: 1, 128>}, {pipeline_mode = #tpu.pipeline_mode<synchronous>, transform_indices = @transform_3, window_bounds = array<i64: 384, 128>}, {pipeline_mode = #tpu.pipeline_mode<synchronous>, transform_indices = @transform_4, window_bounds = array<i64: 1, 128>}, {pipeline_mode = #tpu.pipeline_mode<synchronous>, transform_indices = @transform_5, window_bounds = array<i64: 2048, 128>}, {pipeline_mode = #tpu.pipeline_mode<synchronous>, transform_indices = @transform_6, window_bounds = array<i64: 1, 128>}, {pipeline_mode = #tpu.pipeline_mode<synchronous>, transform_indices = @transform_7, window_bounds = array<i64: 128, 128>}, {pipeline_mode = #tpu.pipeline_mode<synchronous>, transform_indices = @transform_8, window_bounds = array<i64: 1, 128>}, {pipeline_mode = #tpu.pipeline_mode<synchronous>, transform_indices = @transform_9, window_bounds = array<i64: 2, 128>}]} {
    %cst = arith.constant 0.000000e+00 : f32
    %0 = vector.broadcast %cst : f32 to vector<2x1x128xf32>
    %c0 = arith.constant 0 : index
    %c1 = arith.constant 1 : index
    %c0_0 = arith.constant 0 : index
    %1 = vector.load %arg11[%c0, %c1, %c0_0] : memref<2x18x384xf32, #tpu.memory_space<vmem>>, vector<2x1x128xf32>
    tpu.vector_store %arg11[%c0, %c1, %c0_0], %0 {strides = array<i32>} : memref<2x18x384xf32, #tpu.memory_space<vmem>>, vector<2x1x128xf32>,
    %c0_1 = arith.constant 0 : index
    %c16 = arith.constant 16 : index
    %c256 = arith.constant 256 : index
    %2 = vector.load %arg11[%c0_1, %c16, %c256] : memref<2x18x384xf32, #tpu.memory_space<vmem>>, vector<2x1x128xf32>
    tpu.vector_store %arg11[%c0_1, %c16, %c256], %0 {strides = array<i32>} : memref<2x18x384xf32, #tpu.memory_space<vmem>>, vector<2x1x128xf32>,
    %c0_2 = arith.constant 0 : index
    %c0_3 = arith.constant 0 : index
    %c0_4 = arith.constant 0 : index
    %3 = vector.load %arg1[%c0_2, %c0_3, %c0_4] : memref<2x16x128xf32, #tpu.memory_space<vmem>>, vector<2x16x128xf32>
    %c0_5 = arith.constant 0 : index
    %c0_6 = arith.constant 0 : index
    %4 = vector.load %arg3[%c0_5, %c0_6] : memref<1x128xf32, #tpu.memory_space<vmem>>, vector<1x128xf32>
    %c0_7 = arith.constant 0 : index
    %c2 = arith.constant 2 : index
    %c0_8 = arith.constant 0 : index
    %5 = vector.load %arg11[%c0_7, %c2, %c0_8] : memref<2x18x384xf32, #tpu.memory_space<vmem>>, vector<2x16x128xf32>
    tpu.vector_store %arg11[%c0_7, %c2, %c0_8], %3 {strides = array<i32>} : memref<2x18x384xf32, #tpu.memory_space<vmem>>, vector<2x16x128xf32>,
    %c0_9 = arith.constant 0 : index
    %c1_10 = arith.constant 1 : index
    %c128 = arith.constant 128 : index
    %6 = vector.load %arg11[%c0_9, %c1_10, %c128] : memref<2x18x384xf32, #tpu.memory_space<vmem>>, vector<2x16x128xf32>
    tpu.vector_store %arg11[%c0_9, %c1_10, %c128], %3 {strides = array<i32>} : memref<2x18x384xf32, #tpu.memory_space<vmem>>, vector<2x16x128xf32>,
    %c0_11 = arith.constant 0 : index
    %c0_12 = arith.constant 0 : index
    %c256_13 = arith.constant 256 : index
    %7 = vector.load %arg11[%c0_11, %c0_12, %c256_13] : memref<2x18x384xf32, #tpu.memory_space<vmem>>, vector<2x16x128xf32>
    tpu.vector_store %arg11[%c0_11, %c0_12, %c256_13], %3 {strides = array<i32>} : memref<2x18x384xf32, #tpu.memory_space<vmem>>, vector<2x16x128xf32>,
    %c0_14 = arith.constant 0 : index
    %c1_15 = arith.constant 1 : index
    %c0_16 = arith.constant 0 : index
    %8 = vector.load %arg11[%c0_14, %c1_15, %c0_16] : memref<2x18x384xf32, #tpu.memory_space<vmem>>, vector<2x16x384xf32>
    %9 = vector.shape_cast %8 : vector<2x16x384xf32> to vector<32x384xf32>
    %10 = arith.truncf %9 : vector<32x384xf32> to vector<32x384xbf16>
    %c0_17 = arith.constant 0 : index
    %c0_18 = arith.constant 0 : index
    %11 = vector.load %arg2[%c0_17, %c0_18] : memref<384x128xbf16, #tpu.memory_space<vmem>>, vector<384x128xbf16>
    %cst_19 = arith.constant dense<0.000000e+00> : vector<32x128xf32>
    %12 = tpu.matmul %10, %11, %cst_19 {dimension_numbers = #tpu.dot_dimension_numbers<[1], [0], [0], [1], [0, 0, 1, 1], [], []>} : vector<32x384xbf16>, vector<384x128xbf16>, vector<32x128xf32> -> vector<32x128xf32>
    %13 = vector.broadcast %4 : vector<1x128xf32> to vector<32x128xf32>
    %14 = arith.addf %12, %13 : vector<32x128xf32>
    %cst_20 = arith.constant 0.000000e+00 : f32
    %15 = vector.broadcast %cst_20 : f32 to vector<32x128xf32>
    %16 = arith.maximumf %14, %15 : vector<32x128xf32>
    %17 = vector.shape_cast %16 : vector<32x128xf32> to vector<2x16x128xf32>
    %c0_21 = arith.constant 0 : index
    %c0_22 = arith.constant 0 : index
    %18 = vector.load %arg5[%c0_21, %c0_22] : memref<1x128xf32, #tpu.memory_space<vmem>>, vector<1x128xf32>
    %c0_23 = arith.constant 0 : index
    %c2_24 = arith.constant 2 : index
    %c0_25 = arith.constant 0 : index
    %19 = vector.load %arg11[%c0_23, %c2_24, %c0_25] : memref<2x18x384xf32, #tpu.memory_space<vmem>>, vector<2x16x128xf32>
    tpu.vector_store %arg11[%c0_23, %c2_24, %c0_25], %17 {strides = array<i32>} : memref<2x18x384xf32, #tpu.memory_space<vmem>>, vector<2x16x128xf32>,
    %c0_26 = arith.constant 0 : index
    %c1_27 = arith.constant 1 : index
    %c128_28 = arith.constant 128 : index
    %20 = vector.load %arg11[%c0_26, %c1_27, %c128_28] : memref<2x18x384xf32, #tpu.memory_space<vmem>>, vector<2x16x128xf32>
    tpu.vector_store %arg11[%c0_26, %c1_27, %c128_28], %17 {strides = array<i32>} : memref<2x18x384xf32, #tpu.memory_space<vmem>>, vector<2x16x128xf32>,
    %c0_29 = arith.constant 0 : index
    %c0_30 = arith.constant 0 : index
    %c256_31 = arith.constant 256 : index
    %21 = vector.load %arg11[%c0_29, %c0_30, %c256_31] : memref<2x18x384xf32, #tpu.memory_space<vmem>>, vector<2x16x128xf32>
    tpu.vector_store %arg11[%c0_29, %c0_30, %c256_31], %17 {strides = array<i32>} : memref<2x18x384xf32, #tpu.memory_space<vmem>>, vector<2x16x128xf32>,
    %c0_32 = arith.constant 0 : index
    %c1_33 = arith.constant 1 : index
    %c0_34 = arith.constant 0 : index
    %22 = vector.load %arg11[%c0_32, %c1_33, %c0_34] : memref<2x18x384xf32, #tpu.memory_space<vmem>>, vector<2x16x384xf32>
    %23 = vector.shape_cast %22 : vector<2x16x384xf32> to vector<32x384xf32>
    %24 = arith.truncf %23 : vector<32x384xf32> to vector<32x384xbf16>
    %c0_35 = arith.constant 0 : index
    %c0_36 = arith.constant 0 : index
    %25 = vector.load %arg4[%c0_35, %c0_36] : memref<384x128xbf16, #tpu.memory_space<vmem>>, vector<384x128xbf16>
    %cst_37 = arith.constant dense<0.000000e+00> : vector<32x128xf32>
    %26 = tpu.matmul %24, %25, %cst_37 {dimension_numbers = #tpu.dot_dimension_numbers<[1], [0], [0], [1], [0, 0, 1, 1], [], []>} : vector<32x384xbf16>, vector<384x128xbf16>, vector<32x128xf32> -> vector<32x128xf32>
    %27 = vector.broadcast %18 : vector<1x128xf32> to vector<32x128xf32>
    %28 = arith.addf %26, %27 : vector<32x128xf32>
    %cst_38 = arith.constant 0.000000e+00 : f32
    %29 = vector.broadcast %cst_38 : f32 to vector<32x128xf32>
    %30 = arith.maximumf %28, %29 : vector<32x128xf32>
    %31 = arith.truncf %30 : vector<32x128xf32> to vector<32x128xbf16>
    %32 = vector.shape_cast %31 : vector<32x128xbf16> to vector<2x16x128xbf16>
    %33 = vector.extract_strided_slice %32 {offsets = [0, 0, 0], sizes = [2, 1, 128], strides = [1, 1, 1]} : vector<2x16x128xbf16> to vector<2x1x128xbf16>
    %34 = vector.shape_cast %33 : vector<2x1x128xbf16> to vector<2x128xbf16>
    %35 = vector.extract_strided_slice %32 {offsets = [0, 1, 0], sizes = [2, 1, 128], strides = [1, 1, 1]} : vector<2x16x128xbf16> to vector<2x1x128xbf16>
    %36 = vector.shape_cast %35 : vector<2x1x128xbf16> to vector<2x128xbf16>
    %37 = vector.extract_strided_slice %32 {offsets = [0, 2, 0], sizes = [2, 1, 128], strides = [1, 1, 1]} : vector<2x16x128xbf16> to vector<2x1x128xbf16>
    %38 = vector.shape_cast %37 : vector<2x1x128xbf16> to vector<2x128xbf16>
    %39 = vector.extract_strided_slice %32 {offsets = [0, 3, 0], sizes = [2, 1, 128], strides = [1, 1, 1]} : vector<2x16x128xbf16> to vector<2x1x128xbf16>
    %40 = vector.shape_cast %39 : vector<2x1x128xbf16> to vector<2x128xbf16>
    %41 = vector.extract_strided_slice %32 {offsets = [0, 4, 0], sizes = [2, 1, 128], strides = [1, 1, 1]} : vector<2x16x128xbf16> to vector<2x1x128xbf16>
    %42 = vector.shape_cast %41 : vector<2x1x128xbf16> to vector<2x128xbf16>
    %43 = vector.extract_strided_slice %32 {offsets = [0, 5, 0], sizes = [2, 1, 128], strides = [1, 1, 1]} : vector<2x16x128xbf16> to vector<2x1x128xbf16>
    %44 = vector.shape_cast %43 : vector<2x1x128xbf16> to vector<2x128xbf16>
    %45 = vector.extract_strided_slice %32 {offsets = [0, 6, 0], sizes = [2, 1, 128], strides = [1, 1, 1]} : vector<2x16x128xbf16> to vector<2x1x128xbf16>
    %46 = vector.shape_cast %45 : vector<2x1x128xbf16> to vector<2x128xbf16>
    %47 = vector.extract_strided_slice %32 {offsets = [0, 7, 0], sizes = [2, 1, 128], strides = [1, 1, 1]} : vector<2x16x128xbf16> to vector<2x1x128xbf16>
    %48 = vector.shape_cast %47 : vector<2x1x128xbf16> to vector<2x128xbf16>
    %49 = vector.extract_strided_slice %32 {offsets = [0, 8, 0], sizes = [2, 1, 128], strides = [1, 1, 1]} : vector<2x16x128xbf16> to vector<2x1x128xbf16>
    %50 = vector.shape_cast %49 : vector<2x1x128xbf16> to vector<2x128xbf16>
    %51 = vector.extract_strided_slice %32 {offsets = [0, 9, 0], sizes = [2, 1, 128], strides = [1, 1, 1]} : vector<2x16x128xbf16> to vector<2x1x128xbf16>
    %52 = vector.shape_cast %51 : vector<2x1x128xbf16> to vector<2x128xbf16>
    %53 = vector.extract_strided_slice %32 {offsets = [0, 10, 0], sizes = [2, 1, 128], strides = [1, 1, 1]} : vector<2x16x128xbf16> to vector<2x1x128xbf16>
    %54 = vector.shape_cast %53 : vector<2x1x128xbf16> to vector<2x128xbf16>
    %55 = vector.extract_strided_slice %32 {offsets = [0, 11, 0], sizes = [2, 1, 128], strides = [1, 1, 1]} : vector<2x16x128xbf16> to vector<2x1x128xbf16>
    %56 = vector.shape_cast %55 : vector<2x1x128xbf16> to vector<2x128xbf16>
    %57 = vector.extract_strided_slice %32 {offsets = [0, 12, 0], sizes = [2, 1, 128], strides = [1, 1, 1]} : vector<2x16x128xbf16> to vector<2x1x128xbf16>
    %58 = vector.shape_cast %57 : vector<2x1x128xbf16> to vector<2x128xbf16>
    %59 = vector.extract_strided_slice %32 {offsets = [0, 13, 0], sizes = [2, 1, 128], strides = [1, 1, 1]} : vector<2x16x128xbf16> to vector<2x1x128xbf16>
    %60 = vector.shape_cast %59 : vector<2x1x128xbf16> to vector<2x128xbf16>
    %61 = vector.extract_strided_slice %32 {offsets = [0, 14, 0], sizes = [2, 1, 128], strides = [1, 1, 1]} : vector<2x16x128xbf16> to vector<2x1x128xbf16>
    %62 = vector.shape_cast %61 : vector<2x1x128xbf16> to vector<2x128xbf16>
    %63 = vector.extract_strided_slice %32 {offsets = [0, 15, 0], sizes = [2, 1, 128], strides = [1, 1, 1]} : vector<2x16x128xbf16> to vector<2x1x128xbf16>
    %64 = vector.shape_cast %63 : vector<2x1x128xbf16> to vector<2x128xbf16>
    %65 = tpu.concatenate %34, %36, %38, %40, %42, %44, %46, %48, %50, %52, %54, %56, %58, %60, %62, %64 in 1 : vector<2x128xbf16>, vector<2x128xbf16>, vector<2x128xbf16>, vector<2x128xbf16>, vector<2x128xbf16>, vector<2x128xbf16>, vector<2x128xbf16>, vector<2x128xbf16>, vector<2x128xbf16>, vector<2x128xbf16>, vector<2x128xbf16>, vector<2x128xbf16>, vector<2x128xbf16>, vector<2x128xbf16>, vector<2x128xbf16>, vector<2x128xbf16> -> vector<2x2048xbf16>
    %c0_39 = arith.constant 0 : index
    %c0_40 = arith.constant 0 : index
    %66 = vector.load %arg6[%c0_39, %c0_40] : memref<2048x128xbf16, #tpu.memory_space<vmem>>, vector<2048x128xbf16>
    %cst_41 = arith.constant dense<0.000000e+00> : vector<2x128xf32>
    %67 = tpu.matmul %65, %66, %cst_41 {dimension_numbers = #tpu.dot_dimension_numbers<[1], [0], [0], [1], [0, 0, 1, 1], [], []>} : vector<2x2048xbf16>, vector<2048x128xbf16>, vector<2x128xf32> -> vector<2x128xf32>
    %c0_42 = arith.constant 0 : index
    %c0_43 = arith.constant 0 : index
    %68 = vector.load %arg7[%c0_42, %c0_43] : memref<1x128xf32, #tpu.memory_space<vmem>>, vector<1x128xf32>
    %69 = vector.broadcast %68 : vector<1x128xf32> to vector<2x128xf32>
    %70 = arith.addf %67, %69 : vector<2x128xf32>
    %cst_44 = arith.constant 0.000000e+00 : f32
    %71 = vector.broadcast %cst_44 : f32 to vector<2x128xf32>
    %72 = arith.maximumf %70, %71 : vector<2x128xf32>
    %73 = arith.truncf %72 : vector<2x128xf32> to vector<2x128xbf16>
    %c0_45 = arith.constant 0 : index
    %c0_46 = arith.constant 0 : index
    %74 = vector.load %arg8[%c0_45, %c0_46] : memref<128x128xbf16, #tpu.memory_space<vmem>>, vector<128x128xbf16>
    %cst_47 = arith.constant dense<0.000000e+00> : vector<2x128xf32>
    %75 = tpu.matmul %73, %74, %cst_47 {dimension_numbers = #tpu.dot_dimension_numbers<[1], [0], [0], [1], [0, 0, 1, 1], [], []>} : vector<2x128xbf16>, vector<128x128xbf16>, vector<2x128xf32> -> vector<2x128xf32>
    %c0_48 = arith.constant 0 : index
    %c0_49 = arith.constant 0 : index
    %76 = vector.load %arg9[%c0_48, %c0_49] : memref<1x128xf32, #tpu.memory_space<vmem>>, vector<1x128xf32>
    %77 = vector.broadcast %76 : vector<1x128xf32> to vector<2x128xf32>
    %78 = arith.addf %75, %77 : vector<2x128xf32>
    %c0_50 = arith.constant 0 : index
    %c0_51 = arith.constant 0 : index
    %79 = vector.load %arg10[%c0_50, %c0_51] : memref<2x128xf32, #tpu.memory_space<vmem>>, vector<2x128xf32>
    tpu.vector_store %arg10[%c0_50, %c0_51], %78 {strides = array<i32>} : memref<2x128xf32, #tpu.memory_space<vmem>>, vector<2x128xf32>,
    return
  }
  func.func @transform_0(%arg0: i32) -> (i32, i32, i32) {
    %c0_i32 = arith.constant 0 : i32
    %c0_i32_0 = arith.constant 0 : i32
    %c0_i32_1 = arith.constant 0 : i32
    %c0_i32_2 = arith.constant 0 : i32
    return %c0_i32, %c0_i32_0, %c0_i32_1 : i32, i32, i32
  }
  func.func @transform_1(%arg0: i32) -> (i32, i32) {
    %c0_i32 = arith.constant 0 : i32
    %c0_i32_0 = arith.constant 0 : i32
    %c0_i32_1 = arith.constant 0 : i32
    return %c0_i32, %c0_i32_0 : i32, i32
  }
  func.func @transform_2(%arg0: i32) -> (i32, i32) {
    %c0_i32 = arith.constant 0 : i32
    %c0_i32_0 = arith.constant 0 : i32
    %c0_i32_1 = arith.constant 0 : i32
    return %c0_i32, %c0_i32_0 : i32, i32
  }
  func.func @transform_3(%arg0: i32) -> (i32, i32) {
    %c0_i32 = arith.constant 0 : i32
    %c0_i32_0 = arith.constant 0 : i32
    %c0_i32_1 = arith.constant 0 : i32
    return %c0_i32, %c0_i32_0 : i32, i32
  }
  func.func @transform_4(%arg0: i32) -> (i32, i32) {
    %c0_i32 = arith.constant 0 : i32
    %c0_i32_0 = arith.constant 0 : i32
    %c0_i32_1 = arith.constant 0 : i32
    return %c0_i32, %c0_i32_0 : i32, i32
  }
  func.func @transform_5(%arg0: i32) -> (i32, i32) {
    %c0_i32 = arith.constant 0 : i32
    %c0_i32_0 = arith.constant 0 : i32
    %c0_i32_1 = arith.constant 0 : i32
    return %c0_i32, %c0_i32_0 : i32, i32
  }
  func.func @transform_6(%arg0: i32) -> (i32, i32) {
    %c0_i32 = arith.constant 0 : i32
    %c0_i32_0 = arith.constant 0 : i32
    %c0_i32_1 = arith.constant 0 : i32
    return %c0_i32, %c0_i32_0 : i32, i32
  }
  func.func @transform_7(%arg0: i32) -> (i32, i32) {
    %c0_i32 = arith.constant 0 : i32
    %c0_i32_0 = arith.constant 0 : i32
    %c0_i32_1 = arith.constant 0 : i32
    return %c0_i32, %c0_i32_0 : i32, i32
  }
  func.func @transform_8(%arg0: i32) -> (i32, i32) {
    %c0_i32 = arith.constant 0 : i32
    %c0_i32_0 = arith.constant 0 : i32
    %c0_i32_1 = arith.constant 0 : i32
    return %c0_i32, %c0_i32_0 : i32, i32
  }
  func.func @transform_9(%arg0: i32) -> (i32, i32) {
    %c0_i32 = arith.constant 0 : i32
    %c0_i32_0 = arith.constant 0 : i32
    %c0_i32_1 = arith.constant 0 : i32
    return %c0_i32, %c0_i32_0 : i32, i32
  }
}

</mosaic_0001>

<llo_original>
// kernel: _fused_forward.1
$region0: #{_fused_forward.1}
  #allocation0 [shape = 'u32[]', space=smem, size = 0x4, offset = 0x4, fixed_abs, tag = 'smem constant byte address 0x4 - core index']
  #allocation1 [shape = 'u32[72,128]{1,0:T(1,128)}', space=vmem, size = 0x9000, scoped, tag = 'internal scratch']
  #allocation2 [shape = 'f32[2,18,384]{2,1,0:T(8,128)}', space=vmem, size = 0x12000, scoped, tag = 'scratch operand']
  %s0 = inlined_call_operand.vmem [shape: f32[2,16,128], index: 0, kind: input, shape index: {}]
  %s1 = inlined_call_operand.vmem [shape: bf16[384,128], index: 1, kind: input, shape index: {}]
  %s2 = inlined_call_operand.vmem [shape: f32[1,128], index: 2, kind: input, shape index: {}]
  %s3 = inlined_call_operand.vmem [shape: bf16[384,128], index: 3, kind: input, shape index: {}]
  %s4 = inlined_call_operand.vmem [shape: f32[1,128], index: 4, kind: input, shape index: {}]
  %s5 = inlined_call_operand.hbm [shape: bf16[2048,128], index: 5, kind: input, shape index: {}]
  %s6 = inlined_call_operand.vmem [shape: f32[1,128], index: 6, kind: input, shape index: {}]
  %s7 = inlined_call_operand.vmem [shape: bf16[128,128], index: 7, kind: input, shape index: {}]
  %s8 = inlined_call_operand.vmem [shape: f32[1,128], index: 8, kind: input, shape index: {}]
  %s9 = inlined_call_operand.hbm [shape: f32[2,128], index: 9, kind: output, shape index: {}]
  %s10 = sld [smem:[#allocation0]]
  $region50: #{_fused_forward.1} parent=0
    _
  %s12 = ssub.s32 1, %s10
  %s13 = scalar_select 0, %s12, %s10
  $region1: #{_fused_forward.1} parent=0
    #allocation3 [shape = 'u8[524288]{0}', space=vmem, size = 0x80000, scoped, tag = 'input window, operand 5, single buffered']
    #allocation4 [shape = 's32[1]{0}', space=sflag, size = 0x4, scoped, tag = 'scoped memory for _fused_forward.1']
    #allocation5 [shape = 's32[1]{0}', space=sflag, size = 0x4, scoped, tag = 'scoped memory for _fused_forward.1']
    #allocation6 [shape = 'u8[1024]{0}', space=vmem, size = 0x400, scoped, tag = 'output window, operand 0, single buffered']
    %14 = vsyncpa [#allocation4], 0
    %15 = vsyncpa [#allocation5], 0
    // Predicated region
    $region2: #{_fused_forward.1} parent=1 // pred_check
      _
    $region3: #{_fused_forward.1} parent=1 // pred_check_branch
      %17 = sbr.rel (0) target = $region5
    $region4: #{_fused_forward.1} parent=1 // pred_region
      _
    $region5: #{_fused_forward.1} parent=1 // pred_fallthru
      _
    // Predicated region
    $region6: #{_fused_forward.1} parent=1 // pred_check
      _
    $region7: #{_fused_forward.1} parent=1 // pred_check_branch
      %19 = sbr.rel (0) target = $region9
    $region8: #{_fused_forward.1} parent=1 // pred_region
      _
    $region9: #{_fused_forward.1} parent=1 // pred_fallthru
      _
    // Predicated region
    $region10: #{_fused_forward.1} parent=1 // pred_check
      _
    $region11: #{_fused_forward.1} parent=1 // pred_check_branch
      %21 = sbr.rel (0) target = $region13
    $region12: #{_fused_forward.1} parent=1 // pred_region
      _
    $region13: #{_fused_forward.1} parent=1 // pred_fallthru
      _
    // Predicated region
    $region14: #{_fused_forward.1} parent=1 // pred_check
      _
    $region15: #{_fused_forward.1} parent=1 // pred_check_branch
      %23 = sbr.rel (0) target = $region17
    $region16: #{_fused_forward.1} parent=1 // pred_region
      _
    $region17: #{_fused_forward.1} parent=1 // pred_fallthru
      _
    // Predicated region
    $region18: #{_fused_forward.1} parent=1 // pred_check
      _
    $region19: #{_fused_forward.1} parent=1 // pred_check_branch
      %25 = sbr.rel (0) target = $region21
    $region20: #{_fused_forward.1} parent=1 // pred_region
      _
    $region21: #{_fused_forward.1} parent=1 // pred_fallthru
      _
    // Predicated region
    $region22: #{_fused_forward.1} parent=1 // pred_check
      _
    $region23: #{_fused_forward.1} parent=1 // pred_check_branch
      %27 = sbr.rel (0) target = $region25
    $region24: #{_fused_forward.1} parent=1 // pred_region
      %29 = vsyncadd [#allocation4], 0
      %s30 = sshll.u32 %s5, 4
      %s31 = int_to_ptr.hbm [resolvable:$true] %s30
      %s32 = sshll.u32 [#allocation3], 4
      %s33 = int_to_ptr.vmem [resolvable:$true] %s32
      %38 = dma.hbm_to_vmem [thread:$0]  %s31, 16384, %s33, [#allocation4], 64, 64, 4
    $region25: #{_fused_forward.1} parent=1 // pred_fallthru
      _
    // Predicated region
    $region26: #{_fused_forward.1} parent=1 // pred_check
      _
    $region27: #{_fused_forward.1} parent=1 // pred_check_branch
      %40 = sbr.rel (0) target = $region29
    $region28: #{_fused_forward.1} parent=1 // pred_region
      _
    $region29: #{_fused_forward.1} parent=1 // pred_fallthru
      _
    // Predicated region
    $region30: #{_fused_forward.1} parent=1 // pred_check
      _
    $region31: #{_fused_forward.1} parent=1 // pred_check_branch
      %42 = sbr.rel (0) target = $region33
    $region32: #{_fused_forward.1} parent=1 // pred_region
      _
    $region33: #{_fused_forward.1} parent=1 // pred_fallthru
      _
    // Predicated region
    $region34: #{_fused_forward.1} parent=1 // pred_check
      _
    $region35: #{_fused_forward.1} parent=1 // pred_check_branch
      %44 = sbr.rel (0) target = $region37
    $region36: #{_fused_forward.1} parent=1 // pred_region
      _
    $region37: #{_fused_forward.1} parent=1 // pred_fallthru
      _
    // Predicated region
    $region38: #{_fused_forward.1} parent=1 // pred_check
      _
    $region39: #{_fused_forward.1} parent=1 // pred_check_branch
      %46 = sbr.rel (0) target = $region41
    $region40: #{_fused_forward.1} parent=1 // pred_region
      %48 = dma.done [#allocation4], 16384
    $region41: #{_fused_forward.1} parent=1 // pred_fallthru
      _
    %49 = vst [vmem:[#allocation2 + $0x1] sm:$0x1] 0.0
    %50 = vst [vmem:[#allocation2 + $0x49] sm:$0x1] 0.0
    %51 = vst [vmem:[#allocation2 + $0x40] sm:$0x1] 0.0
    %52 = vst [vmem:[#allocation2 + $0x88] sm:$0x1] 0.0
    %v53 = vld [vmem:[%s0] sm:$0xff]
    %v54 = vld [vmem:[%s0 + $0x8] sm:$0xff]
    %v55 = vld [vmem:[%s0 + $0x10] sm:$0xff]
    %v56 = vld [vmem:[%s0 + $0x18] sm:$0xff]
    %v57 = vld [vmem:[%s2] sm:$0x1]
    %vm62 = vcmask 1041408
    %v63 = vrot.slane %v53, 6
    %v64 = vrot.slane %v54, 6
    %v65 = vsel %vm62, %v63, %v64
    %v66 = vrot.slane %v55, 6
    %v67 = vrot.slane %v56, 6
    %v68 = vsel %vm62, %v66, %v67
    %75 = vst [vmem:[#allocation2] sm:$0xfc] %v63
    %76 = vst [vmem:[#allocation2 + $0x18] sm:$0xff] %v65
    %77 = vst [vmem:[#allocation2 + $0x30] sm:$0x3] %v64
    %78 = vst [vmem:[#allocation2 + $0x48] sm:$0xfc] %v66
    %79 = vst [vmem:[#allocation2 + $0x60] sm:$0xff] %v68
    %80 = vst [vmem:[#allocation2 + $0x78] sm:$0x3] %v67
    %vm81 = vcmask 1040384
    %v82 = vrot.slane %v53, 7
    %v83 = vrot.slane %v54, 7
    %v84 = vsel %vm81, %v82, %v83
    %v85 = vrot.slane %v55, 7
    %v86 = vrot.slane %v56, 7
    %v87 = vsel %vm81, %v85, %v86
    %94 = vst [vmem:[#allocation2 + $0x8] sm:$0xfe] %v82
    %95 = vst [vmem:[#allocation2 + $0x20] sm:$0xff] %v84
    %96 = vst [vmem:[#allocation2 + $0x38] sm:$0x1] %v83
    %97 = vst [vmem:[#allocation2 + $0x50] sm:$0xfe] %v85
    %98 = vst [vmem:[#allocation2 + $0x68] sm:$0xff] %v87
    %99 = vst [vmem:[#allocation2 + $0x80] sm:$0x1] %v86
    %100 = vst [vmem:[#allocation2 + $0x10] sm:$0xff] %v53
    %101 = vst [vmem:[#allocation2 + $0x28] sm:$0xff] %v54
    %102 = vst [vmem:[#allocation2 + $0x58] sm:$0xff] %v55
    %103 = vst [vmem:[#allocation2 + $0x70] sm:$0xff] %v56
    %v104 = vld [vmem:[#allocation2] sm:$0xfe]
    %v105 = vld [vmem:[#allocation2 + $0x8] sm:$0xfe]
    %v106 = vld [vmem:[#allocation2 + $0x10] sm:$0xfe]
    %v107 = vld [vmem:[#allocation2 + $0x18] sm:$0xff]
    %v108 = vld [vmem:[#allocation2 + $0x20] sm:$0xff]
    %v109 = vld [vmem:[#allocation2 + $0x28] sm:$0xff]
    %v110 = vld [vmem:[#allocation2 + $0x30] sm:$0x1]
    %v111 = vld [vmem:[#allocation2 + $0x38] sm:$0x1]
    %v112 = vld [vmem:[#allocation2 + $0x40] sm:$0x1]
    %v113 = vld [vmem:[#allocation2 + $0x48] sm:$0xfe]
    %v114 = vld [vmem:[#allocation2 + $0x50] sm:$0xfe]
    %v115 = vld [vmem:[#allocation2 + $0x58] sm:$0xfe]
    %v116 = vld [vmem:[#allocation2 + $0x60] sm:$0xff]
    %v117 = vld [vmem:[#allocation2 + $0x68] sm:$0xff]
    %v118 = vld [vmem:[#allocation2 + $0x70] sm:$0xff]
    %v119 = vld [vmem:[#allocation2 + $0x78] sm:$0x1]
    %v120 = vld [vmem:[#allocation2 + $0x80] sm:$0x1]
    %v121 = vld [vmem:[#allocation2 + $0x88] sm:$0x1]
    %vm140 = vcmask 1046528
    %v141 = vrot.slane %v104, 1
    %v142 = vrot.slane %v107, 1
    %v143 = vsel %vm140, %v141, %v142
    %v144 = vrot.slane %v105, 1
    %v145 = vrot.slane %v108, 1
    %v146 = vsel %vm140, %v144, %v145
    %v147 = vrot.slane %v106, 1
    %v148 = vrot.slane %v109, 1
    %v149 = vsel %vm140, %v147, %v148
    %v150 = vrot.slane %v110, 1
    %v151 = vsel %vm140, %v142, %v150
    %v152 = vrot.slane %v111, 1
    %v153 = vsel %vm140, %v145, %v152
    %v154 = vrot.slane %v112, 1
    %v155 = vsel %vm140, %v148, %v154
    %v156 = vrot.slane %v113, 1
    %v157 = vrot.slane %v116, 1
    %v158 = vsel %vm140, %v156, %v157
    %v159 = vrot.slane %v114, 1
    %v160 = vrot.slane %v117, 1
    %v161 = vsel %vm140, %v159, %v160
    %v162 = vrot.slane %v115, 1
    %v163 = vrot.slane %v118, 1
    %v164 = vsel %vm140, %v162, %v163
    %v165 = vrot.slane %v119, 1
    %v166 = vsel %vm140, %v157, %v165
    %v167 = vrot.slane %v120, 1
    %v168 = vsel %vm140, %v160, %v167
    %v169 = vrot.slane %v121, 1
    %v170 = vsel %vm140, %v163, %v169
    %v183 = vpack.c.bf16 %v151, %v143
    %v184 = vpack.c.bf16 %v153, %v146
    %v185 = vpack.c.bf16 %v155, %v149
    %v186 = vpack.c.bf16 %v166, %v158
    %v187 = vpack.c.bf16 %v168, %v161
    %v188 = vpack.c.bf16 %v170, %v164
    %v189 = vld [vmem:[%s1] sm:$0xf]
    %v190 = vld [vmem:[%s1 + $0x4] sm:$0xf]
    %v191 = vld [vmem:[%s1 + $0x8] sm:$0xf]
    %v192 = vld [vmem:[%s1 + $0xc] sm:$0xf]
    %v193 = vld [vmem:[%s1 + $0x10] sm:$0xf]
    %v194 = vld [vmem:[%s1 + $0x14] sm:$0xf]
    %v195 = vld [vmem:[%s1 + $0x18] sm:$0xf]
    %v196 = vld [vmem:[%s1 + $0x1c] sm:$0xf]
    %v197 = vld [vmem:[%s1 + $0x20] sm:$0xf]
    %v198 = vld [vmem:[%s1 + $0x24] sm:$0xf]
    %v199 = vld [vmem:[%s1 + $0x28] sm:$0xf]
    %v200 = vld [vmem:[%s1 + $0x2c] sm:$0xf]
    %v201 = vld [vmem:[%s1 + $0x30] sm:$0xf]
    %v202 = vld [vmem:[%s1 + $0x34] sm:$0xf]
    %v203 = vld [vmem:[%s1 + $0x38] sm:$0xf]
    %v204 = vld [vmem:[%s1 + $0x3c] sm:$0xf]
    %v205 = vld [vmem:[%s1 + $0x40] sm:$0xf]
    %v206 = vld [vmem:[%s1 + $0x44] sm:$0xf]
    %v207 = vld [vmem:[%s1 + $0x48] sm:$0xf]
    %v208 = vld [vmem:[%s1 + $0x4c] sm:$0xf]
    %v209 = vld [vmem:[%s1 + $0x50] sm:$0xf]
    %v210 = vld [vmem:[%s1 + $0x54] sm:$0xf]
    %v211 = vld [vmem:[%s1 + $0x58] sm:$0xf]
    %v212 = vld [vmem:[%s1 + $0x5c] sm:$0xf]
    %v213 = vld [vmem:[%s1 + $0x60] sm:$0xf]
    %v214 = vld [vmem:[%s1 + $0x64] sm:$0xf]
    %v215 = vld [vmem:[%s1 + $0x68] sm:$0xf]
    %v216 = vld [vmem:[%s1 + $0x6c] sm:$0xf]
    %v217 = vld [vmem:[%s1 + $0x70] sm:$0xf]
    %v218 = vld [vmem:[%s1 + $0x74] sm:$0xf]
    %v219 = vld [vmem:[%s1 + $0x78] sm:$0xf]
    %v220 = vld [vmem:[%s1 + $0x7c] sm:$0xf]
    %v221 = vld [vmem:[%s1 + $0x80] sm:$0xf]
    %v222 = vld [vmem:[%s1 + $0x84] sm:$0xf]
    %v223 = vld [vmem:[%s1 + $0x88] sm:$0xf]
    %v224 = vld [vmem:[%s1 + $0x8c] sm:$0xf]
    %v225 = vld [vmem:[%s1 + $0x90] sm:$0xf]
    %v226 = vld [vmem:[%s1 + $0x94] sm:$0xf]
    %v227 = vld [vmem:[%s1 + $0x98] sm:$0xf]
    %v228 = vld [vmem:[%s1 + $0x9c] sm:$0xf]
    %v229 = vld [vmem:[%s1 + $0xa0] sm:$0xf]
    %v230 = vld [vmem:[%s1 + $0xa4] sm:$0xf]
    %v231 = vld [vmem:[%s1 + $0xa8] sm:$0xf]
    %v232 = vld [vmem:[%s1 + $0xac] sm:$0xf]
    %v233 = vld [vmem:[%s1 + $0xb0] sm:$0xf]
    %v234 = vld [vmem:[%s1 + $0xb4] sm:$0xf]
    %v235 = vld [vmem:[%s1 + $0xb8] sm:$0xf]
    %v236 = vld [vmem:[%s1 + $0xbc] sm:$0xf]
    %v238 = vperm.slane %v57, 0
    %v288 = vunpack.c.l.b16 %v189
    %v289 = vunpack.c.l.b16 %v190
    %v290 = vunpack.c.l.b16 %v191
    %v291 = vunpack.c.l.b16 %v192
    %v292 = vunpack.c.l.b16 %v193
    %v293 = vunpack.c.l.b16 %v194
    %v294 = vunpack.c.l.b16 %v195
    %v295 = vunpack.c.l.b16 %v196
    %v296 = vunpack.c.l.b16 %v197
    %v297 = vunpack.c.l.b16 %v198
    %v298 = vunpack.c.l.b16 %v199
    %v299 = vunpack.c.l.b16 %v200
    %v300 = vunpack.c.l.b16 %v201
    %v301 = vunpack.c.l.b16 %v202
    %v302 = vunpack.c.l.b16 %v203
    %v303 = vunpack.c.l.b16 %v204
    %v304 = vunpack.c.l.b16 %v205
    %v305 = vunpack.c.l.b16 %v206
    %v306 = vunpack.c.l.b16 %v207
    %v307 = vunpack.c.l.b16 %v208
    %v308 = vunpack.c.l.b16 %v209
    %v309 = vunpack.c.l.b16 %v210
    %v310 = vunpack.c.l.b16 %v211
    %v311 = vunpack.c.l.b16 %v212
    %v312 = vunpack.c.l.b16 %v213
    %v313 = vunpack.c.l.b16 %v214
    %v314 = vunpack.c.l.b16 %v215
    %v315 = vunpack.c.l.b16 %v216
    %v316 = vunpack.c.l.b16 %v217
    %v317 = vunpack.c.l.b16 %v218
    %v318 = vunpack.c.l.b16 %v219
    %v319 = vunpack.c.l.b16 %v220
    %v320 = vunpack.c.l.b16 %v221
    %v321 = vunpack.c.l.b16 %v222
    %v322 = vunpack.c.l.b16 %v223
    %v323 = vunpack.c.l.b16 %v224
    %v324 = vunpack.c.l.b16 %v225
    %v325 = vunpack.c.l.b16 %v226
    %v326 = vunpack.c.l.b16 %v227
    %v327 = vunpack.c.l.b16 %v228
    %v328 = vunpack.c.l.b16 %v229
    %v329 = vunpack.c.l.b16 %v230
    %v330 = vunpack.c.l.b16 %v231
    %v331 = vunpack.c.l.b16 %v232
    %v332 = vunpack.c.l.b16 %v233
    %v333 = vunpack.c.l.b16 %v234
    %v334 = vunpack.c.l.b16 %v235
    %v335 = vunpack.c.l.b16 %v236
    %v336 = vpack.c.b16 %v289, %v288
    %v337 = vpack.c.b16 %v291, %v290
    %v338 = vpack.c.b16 %v293, %v292
    %v339 = vpack.c.b16 %v295, %v294
    %v340 = vpack.c.b16 %v297, %v296
    %v341 = vpack.c.b16 %v299, %v298
    %v342 = vpack.c.b16 %v301, %v300
    %v343 = vpack.c.b16 %v303, %v302
    %v344 = vpack.c.b16 %v305, %v304
    %v345 = vpack.c.b16 %v307, %v306
    %v346 = vpack.c.b16 %v309, %v308
    %v347 = vpack.c.b16 %v311, %v310
    %v348 = vpack.c.b16 %v313, %v312
    %v349 = vpack.c.b16 %v315, %v314
    %v350 = vpack.c.b16 %v317, %v316
    %v351 = vpack.c.b16 %v319, %v318
    %v352 = vpack.c.b16 %v321, %v320
    %v353 = vpack.c.b16 %v323, %v322
    %v354 = vpack.c.b16 %v325, %v324
    %v355 = vpack.c.b16 %v327, %v326
    %v356 = vpack.c.b16 %v329, %v328
    %v357 = vpack.c.b16 %v331, %v330
    %v358 = vpack.c.b16 %v333, %v332
    %v359 = vpack.c.b16 %v335, %v334
    %384 = vmatpush.bf16.msra.mxu0 %v343
    %385 = vmatpush.bf16.msra.mxu0 %v342
    %386 = vmatpush.bf16.msra.mxu0 %v341
    %387 = vmatpush.bf16.msra.mxu0 %v340
    %388 = vmatpush.bf16.msra.mxu0 %v339
    %389 = vmatpush.bf16.msra.mxu0 %v338
    %390 = vmatpush.bf16.msra.mxu0 %v337
    %391 = vmatpush.bf16.msra.mxu0 %v336
    %392 = vmatmul.bf16.gmra.mxu0 %v183
    %v393 = vpop.f32.mrf.mxu0
    %v394 = vadd.f32 %v238, %v393
    %v395 = vpop.f32.mrf.mxu0
    %v396 = vadd.f32 %v238, %v395
    %397 = vmatmul.bf16.gmra.mxu0 %v186
    %v398 = vpop.f32.mrf.mxu0
    %v399 = vadd.f32 %v238, %v398
    %v400 = vpop.f32.mrf.mxu0
    %v401 = vadd.f32 %v238, %v400
    %402 = vdwg.mxu0
    %403 = vmatpush.bf16.msra.mxu0 %v351
    %404 = vmatpush.bf16.msra.mxu0 %v350
    %405 = vmatpush.bf16.msra.mxu0 %v349
    %406 = vmatpush.bf16.msra.mxu0 %v348
    %407 = vmatpush.bf16.msra.mxu0 %v347
    %408 = vmatpush.bf16.msra.mxu0 %v346
    %409 = vmatpush.bf16.msra.mxu0 %v345
    %410 = vmatpush.bf16.msra.mxu0 %v344
    %411 = vmatmul.bf16.gmra.mxu0 %v184
    %v412 = vpop.f32.mrf.mxu0
    %v413 = vadd.f32 %v394, %v412
    %v414 = vpop.f32.mrf.mxu0
    %v415 = vadd.f32 %v396, %v414
    %416 = vmatmul.bf16.gmra.mxu0 %v187
    %v417 = vpop.f32.mrf.mxu0
    %v418 = vadd.f32 %v399, %v417
    %v419 = vpop.f32.mrf.mxu0
    %v420 = vadd.f32 %v401, %v419
    %421 = vdwg.mxu0
    %422 = vmatpush.bf16.msra.mxu0 %v359
    %423 = vmatpush.bf16.msra.mxu0 %v358
    %424 = vmatpush.bf16.msra.mxu0 %v357
    %425 = vmatpush.bf16.msra.mxu0 %v356
    %426 = vmatpush.bf16.msra.mxu0 %v355
    %427 = vmatpush.bf16.msra.mxu0 %v354
    %428 = vmatpush.bf16.msra.mxu0 %v353
    %429 = vmatpush.bf16.msra.mxu0 %v352
    %430 = vmatmul.bf16.gmra.mxu0 %v185
    %v431 = vpop.f32.mrf.mxu0
    %v432 = vadd.f32 %v413, %v431
    %v433 = vpop.f32.mrf.mxu0
    %v434 = vadd.f32 %v415, %v433
    %435 = vmatmul.bf16.gmra.mxu0 %v188
    %v436 = vpop.f32.mrf.mxu0
    %v437 = vadd.f32 %v418, %v436
    %v438 = vpop.f32.mrf.mxu0
    %v439 = vadd.f32 %v420, %v438
    %440 = vdwg.mxu0
    %v441 = vmax.f32 %v432, 0.0
    %v442 = vmax.f32 %v434, 0.0
    %v443 = vmax.f32 %v437, 0.0
    %v444 = vmax.f32 %v439, 0.0
    %v445 = vld [vmem:[%s4] sm:$0x1]
    %v450 = vrot.slane %v441, 6
    %v451 = vrot.slane %v442, 6
    %v452 = vsel %vm62, %v450, %v451
    %v453 = vrot.slane %v443, 6
    %v454 = vrot.slane %v444, 6
    %v455 = vsel %vm62, %v453, %v454
    %462 = vst [vmem:[#allocation2] sm:$0xfc] %v450
    %463 = vst [vmem:[#allocation2 + $0x18] sm:$0xff] %v452
    %464 = vst [vmem:[#allocation2 + $0x30] sm:$0x3] %v451
    %465 = vst [vmem:[#allocation2 + $0x48] sm:$0xfc] %v453
    %466 = vst [vmem:[#allocation2 + $0x60] sm:$0xff] %v455
    %467 = vst [vmem:[#allocation2 + $0x78] sm:$0x3] %v454
    %v468 = vrot.slane %v441, 7
    %v469 = vrot.slane %v442, 7
    %v470 = vsel %vm81, %v468, %v469
    %v471 = vrot.slane %v443, 7
    %v472 = vrot.slane %v444, 7
    %v473 = vsel %vm81, %v471, %v472
    %480 = vst [vmem:[#allocation2 + $0x8] sm:$0xfe] %v468
    %481 = vst [vmem:[#allocation2 + $0x20] sm:$0xff] %v470
    %482 = vst [vmem:[#allocation2 + $0x38] sm:$0x1] %v469
    %483 = vst [vmem:[#allocation2 + $0x50] sm:$0xfe] %v471
    %484 = vst [vmem:[#allocation2 + $0x68] sm:$0xff] %v473
    %485 = vst [vmem:[#allocation2 + $0x80] sm:$0x1] %v472
    %486 = vst [vmem:[#allocation2 + $0x10] sm:$0xff] %v441
    %487 = vst [vmem:[#allocation2 + $0x28] sm:$0xff] %v442
    %488 = vst [vmem:[#allocation2 + $0x58] sm:$0xff] %v443
    %489 = vst [vmem:[#allocation2 + $0x70] sm:$0xff] %v444
    %v490 = vld [vmem:[#allocation2] sm:$0xfe]
    %v491 = vld [vmem:[#allocation2 + $0x8] sm:$0xfe]
    %v492 = vld [vmem:[#allocation2 + $0x10] sm:$0xfe]
    %v493 = vld [vmem:[#allocation2 + $0x18] sm:$0xff]
    %v494 = vld [vmem:[#allocation2 + $0x20] sm:$0xff]
    %v495 = vld [vmem:[#allocation2 + $0x28] sm:$0xff]
    %v496 = vld [vmem:[#allocation2 + $0x30] sm:$0x1]
    %v497 = vld [vmem:[#allocation2 + $0x38] sm:$0x1]
    %v498 = vld [vmem:[#allocation2 + $0x40] sm:$0x1]
    %v499 = vld [vmem:[#allocation2 + $0x48] sm:$0xfe]
    %v500 = vld [vmem:[#allocation2 + $0x50] sm:$0xfe]
    %v501 = vld [vmem:[#allocation2 + $0x58] sm:$0xfe]
    %v502 = vld [vmem:[#allocation2 + $0x60] sm:$0xff]
    %v503 = vld [vmem:[#allocation2 + $0x68] sm:$0xff]
    %v504 = vld [vmem:[#allocation2 + $0x70] sm:$0xff]
    %v505 = vld [vmem:[#allocation2 + $0x78] sm:$0x1]
    %v506 = vld [vmem:[#allocation2 + $0x80] sm:$0x1]
    %v507 = vld [vmem:[#allocation2 + $0x88] sm:$0x1]
    %v526 = vrot.slane %v490, 1
    %v527 = vrot.slane %v493, 1
    %v528 = vsel %vm140, %v526, %v527
    %v529 = vrot.slane %v491, 1
    %v530 = vrot.slane %v494, 1
    %v531 = vsel %vm140, %v529, %v530
    %v532 = vrot.slane %v492, 1
    %v533 = vrot.slane %v495, 1
    %v534 = vsel %vm140, %v532, %v533
    %v535 = vrot.slane %v496, 1
    %v536 = vsel %vm140, %v527, %v535
    %v537 = vrot.slane %v497, 1
    %v538 = vsel %vm140, %v530, %v537
    %v539 = vrot.slane %v498, 1
    %v540 = vsel %vm140, %v533, %v539
    %v541 = vrot.slane %v499, 1
    %v542 = vrot.slane %v502, 1
    %v543 = vsel %vm140, %v541, %v542
    %v544 = vrot.slane %v500, 1
    %v545 = vrot.slane %v503, 1
    %v546 = vsel %vm140, %v544, %v545
    %v547 = vrot.slane %v501, 1
    %v548 = vrot.slane %v504, 1
    %v549 = vsel %vm140, %v547, %v548
    %v550 = vrot.slane %v505, 1
    %v551 = vsel %vm140, %v542, %v550
    %v552 = vrot.slane %v506, 1
    %v553 = vsel %vm140, %v545, %v552
    %v554 = vrot.slane %v507, 1
    %v555 = vsel %vm140, %v548, %v554
    %v568 = vpack.c.bf16 %v536, %v528
    %v569 = vpack.c.bf16 %v538, %v531
    %v570 = vpack.c.bf16 %v540, %v534
    %v571 = vpack.c.bf16 %v551, %v543
    %v572 = vpack.c.bf16 %v553, %v546
    %v573 = vpack.c.bf16 %v555, %v549
    %v574 = vld [vmem:[%s3] sm:$0xf]
    %v575 = vld [vmem:[%s3 + $0x4] sm:$0xf]
    %v576 = vld [vmem:[%s3 + $0x8] sm:$0xf]
    %v577 = vld [vmem:[%s3 + $0xc] sm:$0xf]
    %v578 = vld [vmem:[%s3 + $0x10] sm:$0xf]
    %v579 = vld [vmem:[%s3 + $0x14] sm:$0xf]
    %v580 = vld [vmem:[%s3 + $0x18] sm:$0xf]
    %v581 = vld [vmem:[%s3 + $0x1c] sm:$0xf]
    %v582 = vld [vmem:[%s3 + $0x20] sm:$0xf]
    %v583 = vld [vmem:[%s3 + $0x24] sm:$0xf]
    %v584 = vld [vmem:[%s3 + $0x28] sm:$0xf]
    %v585 = vld [vmem:[%s3 + $0x2c] sm:$0xf]
    %v586 = vld [vmem:[%s3 + $0x30] sm:$0xf]
    %v587 = vld [vmem:[%s3 + $0x34] sm:$0xf]
    %v588 = vld [vmem:[%s3 + $0x38] sm:$0xf]
    %v589 = vld [vmem:[%s3 + $0x3c] sm:$0xf]
    %v590 = vld [vmem:[%s3 + $0x40] sm:$0xf]
    %v591 = vld [vmem:[%s3 + $0x44] sm:$0xf]
    %v592 = vld [vmem:[%s3 + $0x48] sm:$0xf]
    %v593 = vld [vmem:[%s3 + $0x4c] sm:$0xf]
    %v594 = vld [vmem:[%s3 + $0x50] sm:$0xf]
    %v595 = vld [vmem:[%s3 + $0x54] sm:$0xf]
    %v596 = vld [vmem:[%s3 + $0x58] sm:$0xf]
    %v597 = vld [vmem:[%s3 + $0x5c] sm:$0xf]
    %v598 = vld [vmem:[%s3 + $0x60] sm:$0xf]
    %v599 = vld [vmem:[%s3 + $0x64] sm:$0xf]
    %v600 = vld [vmem:[%s3 + $0x68] sm:$0xf]
    %v601 = vld [vmem:[%s3 + $0x6c] sm:$0xf]
    %v602 = vld [vmem:[%s3 + $0x70] sm:$0xf]
    %v603 = vld [vmem:[%s3 + $0x74] sm:$0xf]
    %v604 = vld [vmem:[%s3 + $0x78] sm:$0xf]
    %v605 = vld [vmem:[%s3 + $0x7c] sm:$0xf]
    %v606 = vld [vmem:[%s3 + $0x80] sm:$0xf]
    %v607 = vld [vmem:[%s3 + $0x84] sm:$0xf]
    %v608 = vld [vmem:[%s3 + $0x88] sm:$0xf]
    %v609 = vld [vmem:[%s3 + $0x8c] sm:$0xf]
    %v610 = vld [vmem:[%s3 + $0x90] sm:$0xf]
    %v611 = vld [vmem:[%s3 + $0x94] sm:$0xf]
    %v612 = vld [vmem:[%s3 + $0x98] sm:$0xf]
    %v613 = vld [vmem:[%s3 + $0x9c] sm:$0xf]
    %v614 = vld [vmem:[%s3 + $0xa0] sm:$0xf]
    %v615 = vld [vmem:[%s3 + $0xa4] sm:$0xf]
    %v616 = vld [vmem:[%s3 + $0xa8] sm:$0xf]
    %v617 = vld [vmem:[%s3 + $0xac] sm:$0xf]
    %v618 = vld [vmem:[%s3 + $0xb0] sm:$0xf]
    %v619 = vld [vmem:[%s3 + $0xb4] sm:$0xf]
    %v620 = vld [vmem:[%s3 + $0xb8] sm:$0xf]
    %v621 = vld [vmem:[%s3 + $0xbc] sm:$0xf]
    %v623 = vperm.slane %v445, 0
    %v673 = vunpack.c.l.b16 %v574
    %v674 = vunpack.c.l.b16 %v575
    %v675 = vunpack.c.l.b16 %v576
    %v676 = vunpack.c.l.b16 %v577
    %v677 = vunpack.c.l.b16 %v578
    %v678 = vunpack.c.l.b16 %v579
    %v679 = vunpack.c.l.b16 %v580
    %v680 = vunpack.c.l.b16 %v581
    %v681 = vunpack.c.l.b16 %v582
    %v682 = vunpack.c.l.b16 %v583
    %v683 = vunpack.c.l.b16 %v584
    %v684 = vunpack.c.l.b16 %v585
    %v685 = vunpack.c.l.b16 %v586
    %v686 = vunpack.c.l.b16 %v587
    %v687 = vunpack.c.l.b16 %v588
    %v688 = vunpack.c.l.b16 %v589
    %v689 = vunpack.c.l.b16 %v590
    %v690 = vunpack.c.l.b16 %v591
    %v691 = vunpack.c.l.b16 %v592
    %v692 = vunpack.c.l.b16 %v593
    %v693 = vunpack.c.l.b16 %v594
    %v694 = vunpack.c.l.b16 %v595
    %v695 = vunpack.c.l.b16 %v596
    %v696 = vunpack.c.l.b16 %v597
    %v697 = vunpack.c.l.b16 %v598
    %v698 = vunpack.c.l.b16 %v599
    %v699 = vunpack.c.l.b16 %v600
    %v700 = vunpack.c.l.b16 %v601
    %v701 = vunpack.c.l.b16 %v602
    %v702 = vunpack.c.l.b16 %v603
    %v703 = vunpack.c.l.b16 %v604
    %v704 = vunpack.c.l.b16 %v605
    %v705 = vunpack.c.l.b16 %v606
    %v706 = vunpack.c.l.b16 %v607
    %v707 = vunpack.c.l.b16 %v608
    %v708 = vunpack.c.l.b16 %v609
    %v709 = vunpack.c.l.b16 %v610
    %v710 = vunpack.c.l.b16 %v611
    %v711 = vunpack.c.l.b16 %v612
    %v712 = vunpack.c.l.b16 %v613
    %v713 = vunpack.c.l.b16 %v614
    %v714 = vunpack.c.l.b16 %v615
    %v715 = vunpack.c.l.b16 %v616
    %v716 = vunpack.c.l.b16 %v617
    %v717 = vunpack.c.l.b16 %v618
    %v718 = vunpack.c.l.b16 %v619
    %v719 = vunpack.c.l.b16 %v620
    %v720 = vunpack.c.l.b16 %v621
    %v721 = vpack.c.b16 %v674, %v673
    %v722 = vpack.c.b16 %v676, %v675
    %v723 = vpack.c.b16 %v678, %v677
    %v724 = vpack.c.b16 %v680, %v679
    %v725 = vpack.c.b16 %v682, %v681
    %v726 = vpack.c.b16 %v684, %v683
    %v727 = vpack.c.b16 %v686, %v685
    %v728 = vpack.c.b16 %v688, %v687
    %v729 = vpack.c.b16 %v690, %v689
    %v730 = vpack.c.b16 %v692, %v691
    %v731 = vpack.c.b16 %v694, %v693
    %v732 = vpack.c.b16 %v696, %v695
    %v733 = vpack.c.b16 %v698, %v697
    %v734 = vpack.c.b16 %v700, %v699
    %v735 = vpack.c.b16 %v702, %v701
    %v736 = vpack.c.b16 %v704, %v703
    %v737 = vpack.c.b16 %v706, %v705
    %v738 = vpack.c.b16 %v708, %v707
    %v739 = vpack.c.b16 %v710, %v709
    %v740 = vpack.c.b16 %v712, %v711
    %v741 = vpack.c.b16 %v714, %v713
    %v742 = vpack.c.b16 %v716, %v715
    %v743 = vpack.c.b16 %v718, %v717
    %v744 = vpack.c.b16 %v720, %v719
    %769 = vmatpush.bf16.msra.mxu0 %v728
    %770 = vmatpush.bf16.msra.mxu0 %v727
    %771 = vmatpush.bf16.msra.mxu0 %v726
    %772 = vmatpush.bf16.msra.mxu0 %v725
    %773 = vmatpush.bf16.msra.mxu0 %v724
    %774 = vmatpush.bf16.msra.mxu0 %v723
    %775 = vmatpush.bf16.msra.mxu0 %v722
    %776 = vmatpush.bf16.msra.mxu0 %v721
    %777 = vmatmul.bf16.gmra.mxu0 %v568
    %v778 = vpop.f32.mrf.mxu0
    %v779 = vadd.f32 %v623, %v778
    %v780 = vpop.f32.mrf.mxu0
    %v781 = vadd.f32 %v623, %v780
    %782 = vmatmul.bf16.gmra.mxu0 %v571
    %v783 = vpop.f32.mrf.mxu0
    %v784 = vadd.f32 %v623, %v783
    %v785 = vpop.f32.mrf.mxu0
    %v786 = vadd.f32 %v623, %v785
    %787 = vdwg.mxu0
    %788 = vmatpush.bf16.msra.mxu0 %v736
    %789 = vmatpush.bf16.msra.mxu0 %v735
    %790 = vmatpush.bf16.msra.mxu0 %v734
    %791 = vmatpush.bf16.msra.mxu0 %v733
    %792 = vmatpush.bf16.msra.mxu0 %v732
    %793 = vmatpush.bf16.msra.mxu0 %v731
    %794 = vmatpush.bf16.msra.mxu0 %v730
    %795 = vmatpush.bf16.msra.mxu0 %v729
    %796 = vmatmul.bf16.gmra.mxu0 %v569
    %v797 = vpop.f32.mrf.mxu0
    %v798 = vadd.f32 %v779, %v797
    %v799 = vpop.f32.mrf.mxu0
    %v800 = vadd.f32 %v781, %v799
    %801 = vmatmul.bf16.gmra.mxu0 %v572
    %v802 = vpop.f32.mrf.mxu0
    %v803 = vadd.f32 %v784, %v802
    %v804 = vpop.f32.mrf.mxu0
    %v805 = vadd.f32 %v786, %v804
    %806 = vdwg.mxu0
    %807 = vmatpush.bf16.msra.mxu0 %v744
    %808 = vmatpush.bf16.msra.mxu0 %v743
    %809 = vmatpush.bf16.msra.mxu0 %v742
    %810 = vmatpush.bf16.msra.mxu0 %v741
    %811 = vmatpush.bf16.msra.mxu0 %v740
    %812 = vmatpush.bf16.msra.mxu0 %v739
    %813 = vmatpush.bf16.msra.mxu0 %v738
    %814 = vmatpush.bf16.msra.mxu0 %v737
    %815 = vmatmul.bf16.gmra.mxu0 %v570
    %v816 = vpop.f32.mrf.mxu0
    %v817 = vadd.f32 %v798, %v816
    %v818 = vpop.f32.mrf.mxu0
    %v819 = vadd.f32 %v800, %v818
    %820 = vmatmul.bf16.gmra.mxu0 %v573
    %v821 = vpop.f32.mrf.mxu0
    %v822 = vadd.f32 %v803, %v821
    %v823 = vpop.f32.mrf.mxu0
    %v824 = vadd.f32 %v805, %v823
    %825 = vdwg.mxu0
    %v826 = vmax.f32 %v817, 0.0
    %v827 = vmax.f32 %v819, 0.0
    %v828 = vmax.f32 %v822, 0.0
    %v829 = vmax.f32 %v824, 0.0
    %v830 = vpack.c.bf16 %v826, %v826
    %v831 = vpack.c.bf16 %v827, %v827
    %v832 = vpack.c.bf16 %v828, %v828
    %v833 = vpack.c.bf16 %v829, %v829
    %v836 = vunpack.c.l.b16 %v830
    %v837 = vunpack.c.l.b16 %v832
    %v838 = vpack.c.b16 %v836, %v836
    %v839 = vpack.c.b16 %v837, %v837
    %v840 = vunpack.c.l.b16 %v838
    %v841 = vunpack.c.l.b16 %v839
    %v842 = vrot.slane %v841, 7
    %vm843 = vcmask 1041409
    %v844 = vsel %vm843, %v842, %v840
    %v845 = vpack.c.b16 %v844, %v844
    %v847 = vrot.slane %v840, 1
    %v848 = vsel %vm843, %v841, %v847
    %v849 = vpack.c.b16 %v848, %v848
    %v851 = vrot.slane %v840, 2
    %v852 = vrot.slane %v841, 1
    %v853 = vsel %vm843, %v852, %v851
    %v854 = vpack.c.b16 %v853, %v853
    %v856 = vrot.slane %v840, 3
    %v857 = vrot.slane %v841, 2
    %v858 = vsel %vm843, %v857, %v856
    %v859 = vpack.c.b16 %v858, %v858
    %v861 = vrot.slane %v840, 4
    %v862 = vrot.slane %v841, 3
    %v863 = vsel %vm843, %v862, %v861
    %v864 = vpack.c.b16 %v863, %v863
    %v866 = vrot.slane %v840, 5
    %v867 = vrot.slane %v841, 4
    %v868 = vsel %vm843, %v867, %v866
    %v869 = vpack.c.b16 %v868, %v868
    %v871 = vrot.slane %v840, 6
    %v872 = vrot.slane %v841, 5
    %v873 = vsel %vm843, %v872, %v871
    %v874 = vpack.c.b16 %v873, %v873
    %v876 = vrot.slane %v840, 7
    %v877 = vrot.slane %v841, 6
    %v878 = vsel %vm843, %v877, %v876
    %v879 = vpack.c.b16 %v878, %v878
    %v883 = vunpack.c.l.b16 %v831
    %v884 = vunpack.c.l.b16 %v833
    %v885 = vpack.c.b16 %v883, %v883
    %v886 = vpack.c.b16 %v884, %v884
    %v887 = vunpack.c.l.b16 %v885
    %v888 = vunpack.c.l.b16 %v886
    %v889 = vrot.slane %v888, 7
    %v890 = vsel %vm843, %v889, %v887
    %v891 = vpack.c.b16 %v890, %v890
    %v893 = vrot.slane %v887, 1
    %v894 = vsel %vm843, %v888, %v893
    %v895 = vpack.c.b16 %v894, %v894
    %v897 = vrot.slane %v887, 2
    %v898 = vrot.slane %v888, 1
    %v899 = vsel %vm843, %v898, %v897
    %v900 = vpack.c.b16 %v899, %v899
    %v902 = vrot.slane %v887, 3
    %v903 = vrot.slane %v888, 2
    %v904 = vsel %vm843, %v903, %v902
    %v905 = vpack.c.b16 %v904, %v904
    %v907 = vrot.slane %v887, 4
    %v908 = vrot.slane %v888, 3
    %v909 = vsel %vm843, %v908, %v907
    %v910 = vpack.c.b16 %v909, %v909
    %v912 = vrot.slane %v887, 5
    %v913 = vrot.slane %v888, 4
    %v914 = vsel %vm843, %v913, %v912
    %v915 = vpack.c.b16 %v914, %v914
    %v917 = vrot.slane %v887, 6
    %v918 = vrot.slane %v888, 5
    %v919 = vsel %vm843, %v918, %v917
    %v920 = vpack.c.b16 %v919, %v919
    %v922 = vrot.slane %v887, 7
    %v923 = vrot.slane %v888, 6
    %v924 = vsel %vm843, %v923, %v922
    %v925 = vpack.c.b16 %v924, %v924
    %v927 = vld [vmem:[#allocation3] sm:$0xf]
    %v928 = vld [vmem:[#allocation3 + $0x4] sm:$0xf]
    %v929 = vld [vmem:[#allocation3 + $0x8] sm:$0xf]
    %v930 = vld [vmem:[#allocation3 + $0xc] sm:$0xf]
    %v931 = vld [vmem:[#allocation3 + $0x10] sm:$0xf]
    %v932 = vld [vmem:[#allocation3 + $0x14] sm:$0xf]
    %v933 = vld [vmem:[#allocation3 + $0x18] sm:$0xf]
    %v934 = vld [vmem:[#allocation3 + $0x1c] sm:$0xf]
    %v935 = vld [vmem:[#allocation3 + $0x20] sm:$0xf]
    %v936 = vld [vmem:[#allocation3 + $0x24] sm:$0xf]
    %v937 = vld [vmem:[#allocation3 + $0x28] sm:$0xf]
    %v938 = vld [vmem:[#allocation3 + $0x2c] sm:$0xf]
    %v939 = vld [vmem:[#allocation3 + $0x30] sm:$0xf]
    %v940 = vld [vmem:[#allocation3 + $0x34] sm:$0xf]
    %v941 = vld [vmem:[#allocation3 + $0x38] sm:$0xf]
    %v942 = vld [vmem:[#allocation3 + $0x3c] sm:$0xf]
    %v943 = vld [vmem:[#allocation3 + $0x40] sm:$0xf]
    %v944 = vld [vmem:[#allocation3 + $0x44] sm:$0xf]
    %v945 = vld [vmem:[#allocation3 + $0x48] sm:$0xf]
    %v946 = vld [vmem:[#allocation3 + $0x4c] sm:$0xf]
    %v947 = vld [vmem:[#allocation3 + $0x50] sm:$0xf]
    %v948 = vld [vmem:[#allocation3 + $0x54] sm:$0xf]
    %v949 = vld [vmem:[#allocation3 + $0x58] sm:$0xf]
    %v950 = vld [vmem:[#allocation3 + $0x5c] sm:$0xf]
    %v951 = vld [vmem:[#allocation3 + $0x60] sm:$0xf]
    %v952 = vld [vmem:[#allocation3 + $0x64] sm:$0xf]
    %v953 = vld [vmem:[#allocation3 + $0x68] sm:$0xf]
    %v954 = vld [vmem:[#allocation3 + $0x6c] sm:$0xf]
    %v955 = vld [vmem:[#allocation3 + $0x70] sm:$0xf]
    %v956 = vld [vmem:[#allocation3 + $0x74] sm:$0xf]
    %v957 = vld [vmem:[#allocation3 + $0x78] sm:$0xf]
    %v958 = vld [vmem:[#allocation3 + $0x7c] sm:$0xf]
    %v959 = vld [vmem:[#allocation3 + $0x80] sm:$0xf]
    %v960 = vld [vmem:[#allocation3 + $0x84] sm:$0xf]
    %v961 = vld [vmem:[#allocation3 + $0x88] sm:$0xf]
    %v962 = vld [vmem:[#allocation3 + $0x8c] sm:$0xf]
    %v963 = vld [vmem:[#allocation3 + $0x90] sm:$0xf]
    %v964 = vld [vmem:[#allocation3 + $0x94] sm:$0xf]
    %v965 = vld [vmem:[#allocation3 + $0x98] sm:$0xf]
    %v966 = vld [vmem:[#allocation3 + $0x9c] sm:$0xf]
    %v967 = vld [vmem:[#allocation3 + $0xa0] sm:$0xf]
    %v968 = vld [vmem:[#allocation3 + $0xa4] sm:$0xf]
    %v969 = vld [vmem:[#allocation3 + $0xa8] sm:$0xf]
    %v970 = vld [vmem:[#allocation3 + $0xac] sm:$0xf]
    %v971 = vld [vmem:[#allocation3 + $0xb0] sm:$0xf]
    %v972 = vld [vmem:[#allocation3 + $0xb4] sm:$0xf]
    %v973 = vld [vmem:[#allocation3 + $0xb8] sm:$0xf]
    %v974 = vld [vmem:[#allocation3 + $0xbc] sm:$0xf]
    %v975 = vld [vmem:[#allocation3 + $0xc0] sm:$0xf]
    %v976 = vld [vmem:[#allocation3 + $0xc4] sm:$0xf]
    %v977 = vld [vmem:[#allocation3 + $0xc8] sm:$0xf]
    %v978 = vld [vmem:[#allocation3 + $0xcc] sm:$0xf]
    %v979 = vld [vmem:[#allocation3 + $0xd0] sm:$0xf]
    %v980 = vld [vmem:[#allocation3 + $0xd4] sm:$0xf]
    %v981 = vld [vmem:[#allocation3 + $0xd8] sm:$0xf]
    %v982 = vld [vmem:[#allocation3 + $0xdc] sm:$0xf]
    %v983 = vld [vmem:[#allocation3 + $0xe0] sm:$0xf]
    %v984 = vld [vmem:[#allocation3 + $0xe4] sm:$0xf]
    %v985 = vld [vmem:[#allocation3 + $0xe8] sm:$0xf]
    %v986 = vld [vmem:[#allocation3 + $0xec] sm:$0xf]
    %v987 = vld [vmem:[#allocation3 + $0xf0] sm:$0xf]
    %v988 = vld [vmem:[#allocation3 + $0xf4] sm:$0xf]
    %v989 = vld [vmem:[#allocation3 + $0xf8] sm:$0xf]
    %v990 = vld [vmem:[#allocation3 + $0xfc] sm:$0xf]
    %v991 = vld [vmem:[#allocation3 + $0x100] sm:$0xf]
    %v992 = vld [vmem:[#allocation3 + $0x104] sm:$0xf]
    %v993 = vld [vmem:[#allocation3 + $0x108] sm:$0xf]
    %v994 = vld [vmem:[#allocation3 + $0x10c] sm:$0xf]
    %v995 = vld [vmem:[#allocation3 + $0x110] sm:$0xf]
    %v996 = vld [vmem:[#allocation3 + $0x114] sm:$0xf]
    %v997 = vld [vmem:[#allocation3 + $0x118] sm:$0xf]
    %v998 = vld [vmem:[#allocation3 + $0x11c] sm:$0xf]
    %v999 = vld [vmem:[#allocation3 + $0x120] sm:$0xf]
    %v1000 = vld [vmem:[#allocation3 + $0x124] sm:$0xf]
    %v1001 = vld [vmem:[#allocation3 + $0x128] sm:$0xf]
    %v1002 = vld [vmem:[#allocation3 + $0x12c] sm:$0xf]
    %v1003 = vld [vmem:[#allocation3 + $0x130] sm:$0xf]
    %v1004 = vld [vmem:[#allocation3 + $0x134] sm:$0xf]
    %v1005 = vld [vmem:[#allocation3 + $0x138] sm:$0xf]
    %v1006 = vld [vmem:[#allocation3 + $0x13c] sm:$0xf]
    %v1007 = vld [vmem:[#allocation3 + $0x140] sm:$0xf]
    %v1008 = vld [vmem:[#allocation3 + $0x144] sm:$0xf]
    %v1009 = vld [vmem:[#allocation3 + $0x148] sm:$0xf]
    %v1010 = vld [vmem:[#allocation3 + $0x14c] sm:$0xf]
    %v1011 = vld [vmem:[#allocation3 + $0x150] sm:$0xf]
    %v1012 = vld [vmem:[#allocation3 + $0x154] sm:$0xf]
    %v1013 = vld [vmem:[#allocation3 + $0x158] sm:$0xf]
    %v1014 = vld [vmem:[#allocation3 + $0x15c] sm:$0xf]
    %v1015 = vld [vmem:[#allocation3 + $0x160] sm:$0xf]
    %v1016 = vld [vmem:[#allocation3 + $0x164] sm:$0xf]
    %v1017 = vld [vmem:[#allocation3 + $0x168] sm:$0xf]
    %v1018 = vld [vmem:[#allocation3 + $0x16c] sm:$0xf]
    %v1019 = vld [vmem:[#allocation3 + $0x170] sm:$0xf]
    %v1020 = vld [vmem:[#allocation3 + $0x174] sm:$0xf]
    %v1021 = vld [vmem:[#allocation3 + $0x178] sm:$0xf]
    %v1022 = vld [vmem:[#allocation3 + $0x17c] sm:$0xf]
    %v1023 = vld [vmem:[#allocation3 + $0x180] sm:$0xf]
    %v1024 = vld [vmem:[#allocation3 + $0x184] sm:$0xf]
    %v1025 = vld [vmem:[#allocation3 + $0x188] sm:$0xf]
    %v1026 = vld [vmem:[#allocation3 + $0x18c] sm:$0xf]
    %v1027 = vld [vmem:[#allocation3 + $0x190] sm:$0xf]
    %v1028 = vld [vmem:[#allocation3 + $0x194] sm:$0xf]
    %v1029 = vld [vmem:[#allocation3 + $0x198] sm:$0xf]
    %v1030 = vld [vmem:[#allocation3 + $0x19c] sm:$0xf]
    %v1031 = vld [vmem:[#allocation3 + $0x1a0] sm:$0xf]
    %v1032 = vld [vmem:[#allocation3 + $0x1a4] sm:$0xf]
    %v1033 = vld [vmem:[#allocation3 + $0x1a8] sm:$0xf]
    %v1034 = vld [vmem:[#allocation3 + $0x1ac] sm:$0xf]
    %v1035 = vld [vmem:[#allocation3 + $0x1b0] sm:$0xf]
    %v1036 = vld [vmem:[#allocation3 + $0x1b4] sm:$0xf]
    %v1037 = vld [vmem:[#allocation3 + $0x1b8] sm:$0xf]
    %v1038 = vld [vmem:[#allocation3 + $0x1bc] sm:$0xf]
    %v1039 = vld [vmem:[#allocation3 + $0x1c0] sm:$0xf]
    %v1040 = vld [vmem:[#allocation3 + $0x1c4] sm:$0xf]
    %v1041 = vld [vmem:[#allocation3 + $0x1c8] sm:$0xf]
    %v1042 = vld [vmem:[#allocation3 + $0x1cc] sm:$0xf]
    %v1043 = vld [vmem:[#allocation3 + $0x1d0] sm:$0xf]
    %v1044 = vld [vmem:[#allocation3 + $0x1d4] sm:$0xf]
    %v1045 = vld [vmem:[#allocation3 + $0x1d8] sm:$0xf]
    %v1046 = vld [vmem:[#allocation3 + $0x1dc] sm:$0xf]
    %v1047 = vld [vmem:[#allocation3 + $0x1e0] sm:$0xf]
    %v1048 = vld [vmem:[#allocation3 + $0x1e4] sm:$0xf]
    %v1049 = vld [vmem:[#allocation3 + $0x1e8] sm:$0xf]
    %v1050 = vld [vmem:[#allocation3 + $0x1ec] sm:$0xf]
    %v1051 = vld [vmem:[#allocation3 + $0x1f0] sm:$0xf]
    %v1052 = vld [vmem:[#allocation3 + $0x1f4] sm:$0xf]
    %v1053 = vld [vmem:[#allocation3 + $0x1f8] sm:$0xf]
    %v1054 = vld [vmem:[#allocation3 + $0x1fc] sm:$0xf]
    %v1055 = vld [vmem:[#allocation3 + $0x200] sm:$0xf]
    %v1056 = vld [vmem:[#allocation3 + $0x204] sm:$0xf]
    %v1057 = vld [vmem:[#allocation3 + $0x208] sm:$0xf]
    %v1058 = vld [vmem:[#allocation3 + $0x20c] sm:$0xf]
    %v1059 = vld [vmem:[#allocation3 + $0x210] sm:$0xf]
    %v1060 = vld [vmem:[#allocation3 + $0x214] sm:$0xf]
    %v1061 = vld [vmem:[#allocation3 + $0x218] sm:$0xf]
    %v1062 = vld [vmem:[#allocation3 + $0x21c] sm:$0xf]
    %v1063 = vld [vmem:[#allocation3 + $0x220] sm:$0xf]
    %v1064 = vld [vmem:[#allocation3 + $0x224] sm:$0xf]
    %v1065 = vld [vmem:[#allocation3 + $0x228] sm:$0xf]
    %v1066 = vld [vmem:[#allocation3 + $0x22c] sm:$0xf]
    %v1067 = vld [vmem:[#allocation3 + $0x230] sm:$0xf]
    %v1068 = vld [vmem:[#allocation3 + $0x234] sm:$0xf]
    %v1069 = vld [vmem:[#allocation3 + $0x238] sm:$0xf]
    %v1070 = vld [vmem:[#allocation3 + $0x23c] sm:$0xf]
    %v1071 = vld [vmem:[#allocation3 + $0x240] sm:$0xf]
    %v1072 = vld [vmem:[#allocation3 + $0x244] sm:$0xf]
    %v1073 = vld [vmem:[#allocation3 + $0x248] sm:$0xf]
    %v1074 = vld [vmem:[#allocation3 + $0x24c] sm:$0xf]
    %v1075 = vld [vmem:[#allocation3 + $0x250] sm:$0xf]
    %v1076 = vld [vmem:[#allocation3 + $0x254] sm:$0xf]
    %v1077 = vld [vmem:[#allocation3 + $0x258] sm:$0xf]
    %v1078 = vld [vmem:[#allocation3 + $0x25c] sm:$0xf]
    %v1079 = vld [vmem:[#allocation3 + $0x260] sm:$0xf]
    %v1080 = vld [vmem:[#allocation3 + $0x264] sm:$0xf]
    %v1081 = vld [vmem:[#allocation3 + $0x268] sm:$0xf]
    %v1082 = vld [vmem:[#allocation3 + $0x26c] sm:$0xf]
    %v1083 = vld [vmem:[#allocation3 + $0x270] sm:$0xf]
    %v1084 = vld [vmem:[#allocation3 + $0x274] sm:$0xf]
    %v1085 = vld [vmem:[#allocation3 + $0x278] sm:$0xf]
    %v1086 = vld [vmem:[#allocation3 + $0x27c] sm:$0xf]
    %v1087 = vld [vmem:[#allocation3 + $0x280] sm:$0xf]
    %v1088 = vld [vmem:[#allocation3 + $0x284] sm:$0xf]
    %v1089 = vld [vmem:[#allocation3 + $0x288] sm:$0xf]
    %v1090 = vld [vmem:[#allocation3 + $0x28c] sm:$0xf]
    %v1091 = vld [vmem:[#allocation3 + $0x290] sm:$0xf]
    %v1092 = vld [vmem:[#allocation3 + $0x294] sm:$0xf]
    %v1093 = vld [vmem:[#allocation3 + $0x298] sm:$0xf]
    %v1094 = vld [vmem:[#allocation3 + $0x29c] sm:$0xf]
    %v1095 = vld [vmem:[#allocation3 + $0x2a0] sm:$0xf]
    %v1096 = vld [vmem:[#allocation3 + $0x2a4] sm:$0xf]
    %v1097 = vld [vmem:[#allocation3 + $0x2a8] sm:$0xf]
    %v1098 = vld [vmem:[#allocation3 + $0x2ac] sm:$0xf]
    %v1099 = vld [vmem:[#allocation3 + $0x2b0] sm:$0xf]
    %v1100 = vld [vmem:[#allocation3 + $0x2b4] sm:$0xf]
    %v1101 = vld [vmem:[#allocation3 + $0x2b8] sm:$0xf]
    %v1102 = vld [vmem:[#allocation3 + $0x2bc] sm:$0xf]
    %v1103 = vld [vmem:[#allocation3 + $0x2c0] sm:$0xf]
    %v1104 = vld [vmem:[#allocation3 + $0x2c4] sm:$0xf]
    %v1105 = vld [vmem:[#allocation3 + $0x2c8] sm:$0xf]
    %v1106 = vld [vmem:[#allocation3 + $0x2cc] sm:$0xf]
    %v1107 = vld [vmem:[#allocation3 + $0x2d0] sm:$0xf]
    %v1108 = vld [vmem:[#allocation3 + $0x2d4] sm:$0xf]
    %v1109 = vld [vmem:[#allocation3 + $0x2d8] sm:$0xf]
    %v1110 = vld [vmem:[#allocation3 + $0x2dc] sm:$0xf]
    %v1111 = vld [vmem:[#allocation3 + $0x2e0] sm:$0xf]
    %v1112 = vld [vmem:[#allocation3 + $0x2e4] sm:$0xf]
    %v1113 = vld [vmem:[#allocation3 + $0x2e8] sm:$0xf]
    %v1114 = vld [vmem:[#allocation3 + $0x2ec] sm:$0xf]
    %v1115 = vld [vmem:[#allocation3 + $0x2f0] sm:$0xf]
    %v1116 = vld [vmem:[#allocation3 + $0x2f4] sm:$0xf]
    %v1117 = vld [vmem:[#allocation3 + $0x2f8] sm:$0xf]
    %v1118 = vld [vmem:[#allocation3 + $0x2fc] sm:$0xf]
    %v1119 = vld [vmem:[#allocation3 + $0x300] sm:$0xf]
    %v1120 = vld [vmem:[#allocation3 + $0x304] sm:$0xf]
    %v1121 = vld [vmem:[#allocation3 + $0x308] sm:$0xf]
    %v1122 = vld [vmem:[#allocation3 + $0x30c] sm:$0xf]
    %v1123 = vld [vmem:[#allocation3 + $0x310] sm:$0xf]
    %v1124 = vld [vmem:[#allocation3 + $0x314] sm:$0xf]
    %v1125 = vld [vmem:[#allocation3 + $0x318] sm:$0xf]
    %v1126 = vld [vmem:[#allocation3 + $0x31c] sm:$0xf]
    %v1127 = vld [vmem:[#allocation3 + $0x320] sm:$0xf]
    %v1128 = vld [vmem:[#allocation3 + $0x324] sm:$0xf]
    %v1129 = vld [vmem:[#allocation3 + $0x328] sm:$0xf]
    %v1130 = vld [vmem:[#allocation3 + $0x32c] sm:$0xf]
    %v1131 = vld [vmem:[#allocation3 + $0x330] sm:$0xf]
    %v1132 = vld [vmem:[#allocation3 + $0x334] sm:$0xf]
    %v1133 = vld [vmem:[#allocation3 + $0x338] sm:$0xf]
    %v1134 = vld [vmem:[#allocation3 + $0x33c] sm:$0xf]
    %v1135 = vld [vmem:[#allocation3 + $0x340] sm:$0xf]
    %v1136 = vld [vmem:[#allocation3 + $0x344] sm:$0xf]
    %v1137 = vld [vmem:[#allocation3 + $0x348] sm:$0xf]
    %v1138 = vld [vmem:[#allocation3 + $0x34c] sm:$0xf]
    %v1139 = vld [vmem:[#allocation3 + $0x350] sm:$0xf]
    %v1140 = vld [vmem:[#allocation3 + $0x354] sm:$0xf]
    %v1141 = vld [vmem:[#allocation3 + $0x358] sm:$0xf]
    %v1142 = vld [vmem:[#allocation3 + $0x35c] sm:$0xf]
    %v1143 = vld [vmem:[#allocation3 + $0x360] sm:$0xf]
    %v1144 = vld [vmem:[#allocation3 + $0x364] sm:$0xf]
    %v1145 = vld [vmem:[#allocation3 + $0x368] sm:$0xf]
    %v1146 = vld [vmem:[#allocation3 + $0x36c] sm:$0xf]
    %v1147 = vld [vmem:[#allocation3 + $0x370] sm:$0xf]
    %v1148 = vld [vmem:[#allocation3 + $0x374] sm:$0xf]
    %v1149 = vld [vmem:[#allocation3 + $0x378] sm:$0xf]
    %v1150 = vld [vmem:[#allocation3 + $0x37c] sm:$0xf]
    %v1151 = vld [vmem:[#allocation3 + $0x380] sm:$0xf]
    %v1152 = vld [vmem:[#allocation3 + $0x384] sm:$0xf]
    %v1153 = vld [vmem:[#allocation3 + $0x388] sm:$0xf]
    %v1154 = vld [vmem:[#allocation3 + $0x38c] sm:$0xf]
    %v1155 = vld [vmem:[#allocation3 + $0x390] sm:$0xf]
    %v1156 = vld [vmem:[#allocation3 + $0x394] sm:$0xf]
    %v1157 = vld [vmem:[#allocation3 + $0x398] sm:$0xf]
    %v1158 = vld [vmem:[#allocation3 + $0x39c] sm:$0xf]
    %v1159 = vld [vmem:[#allocation3 + $0x3a0] sm:$0xf]
    %v1160 = vld [vmem:[#allocation3 + $0x3a4] sm:$0xf]
    %v1161 = vld [vmem:[#allocation3 + $0x3a8] sm:$0xf]
    %v1162 = vld [vmem:[#allocation3 + $0x3ac] sm:$0xf]
    %v1163 = vld [vmem:[#allocation3 + $0x3b0] sm:$0xf]
    %v1164 = vld [vmem:[#allocation3 + $0x3b4] sm:$0xf]
    %v1165 = vld [vmem:[#allocation3 + $0x3b8] sm:$0xf]
    %v1166 = vld [vmem:[#allocation3 + $0x3bc] sm:$0xf]
    %v1167 = vld [vmem:[#allocation3 + $0x3c0] sm:$0xf]
    %v1168 = vld [vmem:[#allocation3 + $0x3c4] sm:$0xf]
    %v1169 = vld [vmem:[#allocation3 + $0x3c8] sm:$0xf]
    %v1170 = vld [vmem:[#allocation3 + $0x3cc] sm:$0xf]
    %v1171 = vld [vmem:[#allocation3 + $0x3d0] sm:$0xf]
    %v1172 = vld [vmem:[#allocation3 + $0x3d4] sm:$0xf]
    %v1173 = vld [vmem:[#allocation3 + $0x3d8] sm:$0xf]
    %v1174 = vld [vmem:[#allocation3 + $0x3dc] sm:$0xf]
    %v1175 = vld [vmem:[#allocation3 + $0x3e0] sm:$0xf]
    %v1176 = vld [vmem:[#allocation3 + $0x3e4] sm:$0xf]
    %v1177 = vld [vmem:[#allocation3 + $0x3e8] sm:$0xf]
    %v1178 = vld [vmem:[#allocation3 + $0x3ec] sm:$0xf]
    %v1179 = vld [vmem:[#allocation3 + $0x3f0] sm:$0xf]
    %v1180 = vld [vmem:[#allocation3 + $0x3f4] sm:$0xf]
    %v1181 = vld [vmem:[#allocation3 + $0x3f8] sm:$0xf]
    %v1182 = vld [vmem:[#allocation3 + $0x3fc] sm:$0xf]
    %v1183 = vld [vmem:[%s6] sm:$0x1]
    %v1185 = vperm.slane %v1183, 0
    %v1443 = vunpack.c.l.b16 %v927
    %v1444 = vunpack.c.l.b16 %v928
    %v1445 = vunpack.c.l.b16 %v929
    %v1446 = vunpack.c.l.b16 %v930
    %v1447 = vunpack.c.l.b16 %v931
    %v1448 = vunpack.c.l.b16 %v932
    %v1449 = vunpack.c.l.b16 %v933
    %v1450 = vunpack.c.l.b16 %v934
    %v1451 = vunpack.c.l.b16 %v935
    %v1452 = vunpack.c.l.b16 %v936
    %v1453 = vunpack.c.l.b16 %v937
    %v1454 = vunpack.c.l.b16 %v938
    %v1455 = vunpack.c.l.b16 %v939
    %v1456 = vunpack.c.l.b16 %v940
    %v1457 = vunpack.c.l.b16 %v941
    %v1458 = vunpack.c.l.b16 %v942
    %v1459 = vunpack.c.l.b16 %v943
    %v1460 = vunpack.c.l.b16 %v944
    %v1461 = vunpack.c.l.b16 %v945
    %v1462 = vunpack.c.l.b16 %v946
    %v1463 = vunpack.c.l.b16 %v947
    %v1464 = vunpack.c.l.b16 %v948
    %v1465 = vunpack.c.l.b16 %v949
    %v1466 = vunpack.c.l.b16 %v950
    %v1467 = vunpack.c.l.b16 %v951
    %v1468 = vunpack.c.l.b16 %v952
    %v1469 = vunpack.c.l.b16 %v953
    %v1470 = vunpack.c.l.b16 %v954
    %v1471 = vunpack.c.l.b16 %v955
    %v1472 = vunpack.c.l.b16 %v956
    %v1473 = vunpack.c.l.b16 %v957
    %v1474 = vunpack.c.l.b16 %v958
    %v1475 = vunpack.c.l.b16 %v959
    %v1476 = vunpack.c.l.b16 %v960
    %v1477 = vunpack.c.l.b16 %v961
    %v1478 = vunpack.c.l.b16 %v962
    %v1479 = vunpack.c.l.b16 %v963
    %v1480 = vunpack.c.l.b16 %v964
    %v1481 = vunpack.c.l.b16 %v965
    %v1482 = vunpack.c.l.b16 %v966
    %v1483 = vunpack.c.l.b16 %v967
    %v1484 = vunpack.c.l.b16 %v968
    %v1485 = vunpack.c.l.b16 %v969
    %v1486 = vunpack.c.l.b16 %v970
    %v1487 = vunpack.c.l.b16 %v971
    %v1488 = vunpack.c.l.b16 %v972
    %v1489 = vunpack.c.l.b16 %v973
    %v1490 = vunpack.c.l.b16 %v974
    %v1491 = vunpack.c.l.b16 %v975
    %v1492 = vunpack.c.l.b16 %v976
    %v1493 = vunpack.c.l.b16 %v977
    %v1494 = vunpack.c.l.b16 %v978
    %v1495 = vunpack.c.l.b16 %v979
    %v1496 = vunpack.c.l.b16 %v980
    %v1497 = vunpack.c.l.b16 %v981
    %v1498 = vunpack.c.l.b16 %v982
    %v1499 = vunpack.c.l.b16 %v983
    %v1500 = vunpack.c.l.b16 %v984
    %v1501 = vunpack.c.l.b16 %v985
    %v1502 = vunpack.c.l.b16 %v986
    %v1503 = vunpack.c.l.b16 %v987
    %v1504 = vunpack.c.l.b16 %v988
    %v1505 = vunpack.c.l.b16 %v989
    %v1506 = vunpack.c.l.b16 %v990
    %v1507 = vunpack.c.l.b16 %v991
    %v1508 = vunpack.c.l.b16 %v992
    %v1509 = vunpack.c.l.b16 %v993
    %v1510 = vunpack.c.l.b16 %v994
    %v1511 = vunpack.c.l.b16 %v995
    %v1512 = vunpack.c.l.b16 %v996
    %v1513 = vunpack.c.l.b16 %v997
    %v1514 = vunpack.c.l.b16 %v998
    %v1515 = vunpack.c.l.b16 %v999
    %v1516 = vunpack.c.l.b16 %v1000
    %v1517 = vunpack.c.l.b16 %v1001
    %v1518 = vunpack.c.l.b16 %v1002
    %v1519 = vunpack.c.l.b16 %v1003
    %v1520 = vunpack.c.l.b16 %v1004
    %v1521 = vunpack.c.l.b16 %v1005
    %v1522 = vunpack.c.l.b16 %v1006
    %v1523 = vunpack.c.l.b16 %v1007
    %v1524 = vunpack.c.l.b16 %v1008
    %v1525 = vunpack.c.l.b16 %v1009
    %v1526 = vunpack.c.l.b16 %v1010
    %v1527 = vunpack.c.l.b16 %v1011
    %v1528 = vunpack.c.l.b16 %v1012
    %v1529 = vunpack.c.l.b16 %v1013
    %v1530 = vunpack.c.l.b16 %v1014
    %v1531 = vunpack.c.l.b16 %v1015
    %v1532 = vunpack.c.l.b16 %v1016
    %v1533 = vunpack.c.l.b16 %v1017
    %v1534 = vunpack.c.l.b16 %v1018
    %v1535 = vunpack.c.l.b16 %v1019
    %v1536 = vunpack.c.l.b16 %v1020
    %v1537 = vunpack.c.l.b16 %v1021
    %v1538 = vunpack.c.l.b16 %v1022
    %v1539 = vunpack.c.l.b16 %v1023
    %v1540 = vunpack.c.l.b16 %v1024
    %v1541 = vunpack.c.l.b16 %v1025
    %v1542 = vunpack.c.l.b16 %v1026
    %v1543 = vunpack.c.l.b16 %v1027
    %v1544 = vunpack.c.l.b16 %v1028
    %v1545 = vunpack.c.l.b16 %v1029
    %v1546 = vunpack.c.l.b16 %v1030
    %v1547 = vunpack.c.l.b16 %v1031
    %v1548 = vunpack.c.l.b16 %v1032
    %v1549 = vunpack.c.l.b16 %v1033
    %v1550 = vunpack.c.l.b16 %v1034
    %v1551 = vunpack.c.l.b16 %v1035
    %v1552 = vunpack.c.l.b16 %v1036
    %v1553 = vunpack.c.l.b16 %v1037
    %v1554 = vunpack.c.l.b16 %v1038
    %v1555 = vunpack.c.l.b16 %v1039
    %v1556 = vunpack.c.l.b16 %v1040
    %v1557 = vunpack.c.l.b16 %v1041
    %v1558 = vunpack.c.l.b16 %v1042
    %v1559 = vunpack.c.l.b16 %v1043
    %v1560 = vunpack.c.l.b16 %v1044
    %v1561 = vunpack.c.l.b16 %v1045
    %v1562 = vunpack.c.l.b16 %v1046
    %v1563 = vunpack.c.l.b16 %v1047
    %v1564 = vunpack.c.l.b16 %v1048
    %v1565 = vunpack.c.l.b16 %v1049
    %v1566 = vunpack.c.l.b16 %v1050
    %v1567 = vunpack.c.l.b16 %v1051
    %v1568 = vunpack.c.l.b16 %v1052
    %v1569 = vunpack.c.l.b16 %v1053
    %v1570 = vunpack.c.l.b16 %v1054
    %v1571 = vunpack.c.l.b16 %v1055
    %v1572 = vunpack.c.l.b16 %v1056
    %v1573 = vunpack.c.l.b16 %v1057
    %v1574 = vunpack.c.l.b16 %v1058
    %v1575 = vunpack.c.l.b16 %v1059
    %v1576 = vunpack.c.l.b16 %v1060
    %v1577 = vunpack.c.l.b16 %v1061
    %v1578 = vunpack.c.l.b16 %v1062
    %v1579 = vunpack.c.l.b16 %v1063
    %v1580 = vunpack.c.l.b16 %v1064
    %v1581 = vunpack.c.l.b16 %v1065
    %v1582 = vunpack.c.l.b16 %v1066
    %v1583 = vunpack.c.l.b16 %v1067
    %v1584 = vunpack.c.l.b16 %v1068
    %v1585 = vunpack.c.l.b16 %v1069
    %v1586 = vunpack.c.l.b16 %v1070
    %v1587 = vunpack.c.l.b16 %v1071
    %v1588 = vunpack.c.l.b16 %v1072
    %v1589 = vunpack.c.l.b16 %v1073
    %v1590 = vunpack.c.l.b16 %v1074
    %v1591 = vunpack.c.l.b16 %v1075
    %v1592 = vunpack.c.l.b16 %v1076
    %v1593 = vunpack.c.l.b16 %v1077
    %v1594 = vunpack.c.l.b16 %v1078
    %v1595 = vunpack.c.l.b16 %v1079
    %v1596 = vunpack.c.l.b16 %v1080
    %v1597 = vunpack.c.l.b16 %v1081
    %v1598 = vunpack.c.l.b16 %v1082
    %v1599 = vunpack.c.l.b16 %v1083
    %v1600 = vunpack.c.l.b16 %v1084
    %v1601 = vunpack.c.l.b16 %v1085
    %v1602 = vunpack.c.l.b16 %v1086
    %v1603 = vunpack.c.l.b16 %v1087
    %v1604 = vunpack.c.l.b16 %v1088
    %v1605 = vunpack.c.l.b16 %v1089
    %v1606 = vunpack.c.l.b16 %v1090
    %v1607 = vunpack.c.l.b16 %v1091
    %v1608 = vunpack.c.l.b16 %v1092
    %v1609 = vunpack.c.l.b16 %v1093
    %v1610 = vunpack.c.l.b16 %v1094
    %v1611 = vunpack.c.l.b16 %v1095
    %v1612 = vunpack.c.l.b16 %v1096
    %v1613 = vunpack.c.l.b16 %v1097
    %v1614 = vunpack.c.l.b16 %v1098
    %v1615 = vunpack.c.l.b16 %v1099
    %v1616 = vunpack.c.l.b16 %v1100
    %v1617 = vunpack.c.l.b16 %v1101
    %v1618 = vunpack.c.l.b16 %v1102
    %v1619 = vunpack.c.l.b16 %v1103
    %v1620 = vunpack.c.l.b16 %v1104
    %v1621 = vunpack.c.l.b16 %v1105
    %v1622 = vunpack.c.l.b16 %v1106
    %v1623 = vunpack.c.l.b16 %v1107
    %v1624 = vunpack.c.l.b16 %v1108
    %v1625 = vunpack.c.l.b16 %v1109
    %v1626 = vunpack.c.l.b16 %v1110
    %v1627 = vunpack.c.l.b16 %v1111
    %v1628 = vunpack.c.l.b16 %v1112
    %v1629 = vunpack.c.l.b16 %v1113
    %v1630 = vunpack.c.l.b16 %v1114
    %v1631 = vunpack.c.l.b16 %v1115
    %v1632 = vunpack.c.l.b16 %v1116
    %v1633 = vunpack.c.l.b16 %v1117
    %v1634 = vunpack.c.l.b16 %v1118
    %v1635 = vunpack.c.l.b16 %v1119
    %v1636 = vunpack.c.l.b16 %v1120
    %v1637 = vunpack.c.l.b16 %v1121
    %v1638 = vunpack.c.l.b16 %v1122
    %v1639 = vunpack.c.l.b16 %v1123
    %v1640 = vunpack.c.l.b16 %v1124
    %v1641 = vunpack.c.l.b16 %v1125
    %v1642 = vunpack.c.l.b16 %v1126
    %v1643 = vunpack.c.l.b16 %v1127
    %v1644 = vunpack.c.l.b16 %v1128
    %v1645 = vunpack.c.l.b16 %v1129
    %v1646 = vunpack.c.l.b16 %v1130
    %v1647 = vunpack.c.l.b16 %v1131
    %v1648 = vunpack.c.l.b16 %v1132
    %v1649 = vunpack.c.l.b16 %v1133
    %v1650 = vunpack.c.l.b16 %v1134
    %v1651 = vunpack.c.l.b16 %v1135
    %v1652 = vunpack.c.l.b16 %v1136
    %v1653 = vunpack.c.l.b16 %v1137
    %v1654 = vunpack.c.l.b16 %v1138
    %v1655 = vunpack.c.l.b16 %v1139
    %v1656 = vunpack.c.l.b16 %v1140
    %v1657 = vunpack.c.l.b16 %v1141
    %v1658 = vunpack.c.l.b16 %v1142
    %v1659 = vunpack.c.l.b16 %v1143
    %v1660 = vunpack.c.l.b16 %v1144
    %v1661 = vunpack.c.l.b16 %v1145
    %v1662 = vunpack.c.l.b16 %v1146
    %v1663 = vunpack.c.l.b16 %v1147
    %v1664 = vunpack.c.l.b16 %v1148
    %v1665 = vunpack.c.l.b16 %v1149
    %v1666 = vunpack.c.l.b16 %v1150
    %v1667 = vunpack.c.l.b16 %v1151
    %v1668 = vunpack.c.l.b16 %v1152
    %v1669 = vunpack.c.l.b16 %v1153
    %v1670 = vunpack.c.l.b16 %v1154
    %v1671 = vunpack.c.l.b16 %v1155
    %v1672 = vunpack.c.l.b16 %v1156
    %v1673 = vunpack.c.l.b16 %v1157
    %v1674 = vunpack.c.l.b16 %v1158
    %v1675 = vunpack.c.l.b16 %v1159
    %v1676 = vunpack.c.l.b16 %v1160
    %v1677 = vunpack.c.l.b16 %v1161
    %v1678 = vunpack.c.l.b16 %v1162
    %v1679 = vunpack.c.l.b16 %v1163
    %v1680 = vunpack.c.l.b16 %v1164
    %v1681 = vunpack.c.l.b16 %v1165
    %v1682 = vunpack.c.l.b16 %v1166
    %v1683 = vunpack.c.l.b16 %v1167
    %v1684 = vunpack.c.l.b16 %v1168
    %v1685 = vunpack.c.l.b16 %v1169
    %v1686 = vunpack.c.l.b16 %v1170
    %v1687 = vunpack.c.l.b16 %v1171
    %v1688 = vunpack.c.l.b16 %v1172
    %v1689 = vunpack.c.l.b16 %v1173
    %v1690 = vunpack.c.l.b16 %v1174
    %v1691 = vunpack.c.l.b16 %v1175
    %v1692 = vunpack.c.l.b16 %v1176
    %v1693 = vunpack.c.l.b16 %v1177
    %v1694 = vunpack.c.l.b16 %v1178
    %v1695 = vunpack.c.l.b16 %v1179
    %v1696 = vunpack.c.l.b16 %v1180
    %v1697 = vunpack.c.l.b16 %v1181
    %v1698 = vunpack.c.l.b16 %v1182
    %v1699 = vpack.c.b16 %v1444, %v1443
    %v1700 = vpack.c.b16 %v1446, %v1445
    %v1701 = vpack.c.b16 %v1448, %v1447
    %v1702 = vpack.c.b16 %v1450, %v1449
    %v1703 = vpack.c.b16 %v1452, %v1451
    %v1704 = vpack.c.b16 %v1454, %v1453
    %v1705 = vpack.c.b16 %v1456, %v1455
    %v1706 = vpack.c.b16 %v1458, %v1457
    %v1707 = vpack.c.b16 %v1460, %v1459
    %v1708 = vpack.c.b16 %v1462, %v1461
    %v1709 = vpack.c.b16 %v1464, %v1463
    %v1710 = vpack.c.b16 %v1466, %v1465
    %v1711 = vpack.c.b16 %v1468, %v1467
    %v1712 = vpack.c.b16 %v1470, %v1469
    %v1713 = vpack.c.b16 %v1472, %v1471
    %v1714 = vpack.c.b16 %v1474, %v1473
    %v1715 = vpack.c.b16 %v1476, %v1475
    %v1716 = vpack.c.b16 %v1478, %v1477
    %v1717 = vpack.c.b16 %v1480, %v1479
    %v1718 = vpack.c.b16 %v1482, %v1481
    %v1719 = vpack.c.b16 %v1484, %v1483
    %v1720 = vpack.c.b16 %v1486, %v1485
    %v1721 = vpack.c.b16 %v1488, %v1487
    %v1722 = vpack.c.b16 %v1490, %v1489
    %v1723 = vpack.c.b16 %v1492, %v1491
    %v1724 = vpack.c.b16 %v1494, %v1493
    %v1725 = vpack.c.b16 %v1496, %v1495
    %v1726 = vpack.c.b16 %v1498, %v1497
    %v1727 = vpack.c.b16 %v1500, %v1499
    %v1728 = vpack.c.b16 %v1502, %v1501
    %v1729 = vpack.c.b16 %v1504, %v1503
    %v1730 = vpack.c.b16 %v1506, %v1505
    %v1731 = vpack.c.b16 %v1508, %v1507
    %v1732 = vpack.c.b16 %v1510, %v1509
    %v1733 = vpack.c.b16 %v1512, %v1511
    %v1734 = vpack.c.b16 %v1514, %v1513
    %v1735 = vpack.c.b16 %v1516, %v1515
    %v1736 = vpack.c.b16 %v1518, %v1517
    %v1737 = vpack.c.b16 %v1520, %v1519
    %v1738 = vpack.c.b16 %v1522, %v1521
    %v1739 = vpack.c.b16 %v1524, %v1523
    %v1740 = vpack.c.b16 %v1526, %v1525
    %v1741 = vpack.c.b16 %v1528, %v1527
    %v1742 = vpack.c.b16 %v1530, %v1529
    %v1743 = vpack.c.b16 %v1532, %v1531
    %v1744 = vpack.c.b16 %v1534, %v1533
    %v1745 = vpack.c.b16 %v1536, %v1535
    %v1746 = vpack.c.b16 %v1538, %v1537
    %v1747 = vpack.c.b16 %v1540, %v1539
    %v1748 = vpack.c.b16 %v1542, %v1541
    %v1749 = vpack.c.b16 %v1544, %v1543
    %v1750 = vpack.c.b16 %v1546, %v1545
    %v1751 = vpack.c.b16 %v1548, %v1547
    %v1752 = vpack.c.b16 %v1550, %v1549
    %v1753 = vpack.c.b16 %v1552, %v1551
    %v1754 = vpack.c.b16 %v1554, %v1553
    %v1755 = vpack.c.b16 %v1556, %v1555
    %v1756 = vpack.c.b16 %v1558, %v1557
    %v1757 = vpack.c.b16 %v1560, %v1559
    %v1758 = vpack.c.b16 %v1562, %v1561
    %v1759 = vpack.c.b16 %v1564, %v1563
    %v1760 = vpack.c.b16 %v1566, %v1565
    %v1761 = vpack.c.b16 %v1568, %v1567
    %v1762 = vpack.c.b16 %v1570, %v1569
    %v1763 = vpack.c.b16 %v1572, %v1571
    %v1764 = vpack.c.b16 %v1574, %v1573
    %v1765 = vpack.c.b16 %v1576, %v1575
    %v1766 = vpack.c.b16 %v1578, %v1577
    %v1767 = vpack.c.b16 %v1580, %v1579
    %v1768 = vpack.c.b16 %v1582, %v1581
    %v1769 = vpack.c.b16 %v1584, %v1583
    %v1770 = vpack.c.b16 %v1586, %v1585
    %v1771 = vpack.c.b16 %v1588, %v1587
    %v1772 = vpack.c.b16 %v1590, %v1589
    %v1773 = vpack.c.b16 %v1592, %v1591
    %v1774 = vpack.c.b16 %v1594, %v1593
    %v1775 = vpack.c.b16 %v1596, %v1595
    %v1776 = vpack.c.b16 %v1598, %v1597
    %v1777 = vpack.c.b16 %v1600, %v1599
    %v1778 = vpack.c.b16 %v1602, %v1601
    %v1779 = vpack.c.b16 %v1604, %v1603
    %v1780 = vpack.c.b16 %v1606, %v1605
    %v1781 = vpack.c.b16 %v1608, %v1607
    %v1782 = vpack.c.b16 %v1610, %v1609
    %v1783 = vpack.c.b16 %v1612, %v1611
    %v1784 = vpack.c.b16 %v1614, %v1613
    %v1785 = vpack.c.b16 %v1616, %v1615
    %v1786 = vpack.c.b16 %v1618, %v1617
    %v1787 = vpack.c.b16 %v1620, %v1619
    %v1788 = vpack.c.b16 %v1622, %v1621
    %v1789 = vpack.c.b16 %v1624, %v1623
    %v1790 = vpack.c.b16 %v1626, %v1625
    %v1791 = vpack.c.b16 %v1628, %v1627
    %v1792 = vpack.c.b16 %v1630, %v1629
    %v1793 = vpack.c.b16 %v1632, %v1631
    %v1794 = vpack.c.b16 %v1634, %v1633
    %v1795 = vpack.c.b16 %v1636, %v1635
    %v1796 = vpack.c.b16 %v1638, %v1637
    %v1797 = vpack.c.b16 %v1640, %v1639
    %v1798 = vpack.c.b16 %v1642, %v1641
    %v1799 = vpack.c.b16 %v1644, %v1643
    %v1800 = vpack.c.b16 %v1646, %v1645
    %v1801 = vpack.c.b16 %v1648, %v1647
    %v1802 = vpack.c.b16 %v1650, %v1649
    %v1803 = vpack.c.b16 %v1652, %v1651
    %v1804 = vpack.c.b16 %v1654, %v1653
    %v1805 = vpack.c.b16 %v1656, %v1655
    %v1806 = vpack.c.b16 %v1658, %v1657
    %v1807 = vpack.c.b16 %v1660, %v1659
    %v1808 = vpack.c.b16 %v1662, %v1661
    %v1809 = vpack.c.b16 %v1664, %v1663
    %v1810 = vpack.c.b16 %v1666, %v1665
    %v1811 = vpack.c.b16 %v1668, %v1667
    %v1812 = vpack.c.b16 %v1670, %v1669
    %v1813 = vpack.c.b16 %v1672, %v1671
    %v1814 = vpack.c.b16 %v1674, %v1673
    %v1815 = vpack.c.b16 %v1676, %v1675
    %v1816 = vpack.c.b16 %v1678, %v1677
    %v1817 = vpack.c.b16 %v1680, %v1679
    %v1818 = vpack.c.b16 %v1682, %v1681
    %v1819 = vpack.c.b16 %v1684, %v1683
    %v1820 = vpack.c.b16 %v1686, %v1685
    %v1821 = vpack.c.b16 %v1688, %v1687
    %v1822 = vpack.c.b16 %v1690, %v1689
    %v1823 = vpack.c.b16 %v1692, %v1691
    %v1824 = vpack.c.b16 %v1694, %v1693
    %v1825 = vpack.c.b16 %v1696, %v1695
    %v1826 = vpack.c.b16 %v1698, %v1697
    %1955 = vmatpush.bf16.msra.mxu0 %v1706
    %1956 = vmatpush.bf16.msra.mxu0 %v1705
    %1957 = vmatpush.bf16.msra.mxu0 %v1704
    %1958 = vmatpush.bf16.msra.mxu0 %v1703
    %1959 = vmatpush.bf16.msra.mxu0 %v1702
    %1960 = vmatpush.bf16.msra.mxu0 %v1701
    %1961 = vmatpush.bf16.msra.mxu0 %v1700
    %1962 = vmatpush.bf16.msra.mxu0 %v1699
    %1963 = vmatmul.bf16.gmra.mxu0 %v845
    %v1964 = vpop.f32.mrf.mxu0
    %v1965 = vadd.f32 %v1185, %v1964
    %v1966 = vpop.f32.mrf.mxu0
    %1967 = vdwg.mxu0
    %1968 = vmatpush.bf16.msra.mxu0 %v1714
    %1969 = vmatpush.bf16.msra.mxu0 %v1713
    %1970 = vmatpush.bf16.msra.mxu0 %v1712
    %1971 = vmatpush.bf16.msra.mxu0 %v1711
    %1972 = vmatpush.bf16.msra.mxu0 %v1710
    %1973 = vmatpush.bf16.msra.mxu0 %v1709
    %1974 = vmatpush.bf16.msra.mxu0 %v1708
    %1975 = vmatpush.bf16.msra.mxu0 %v1707
    %1976 = vmatmul.bf16.gmra.mxu0 %v849
    %v1977 = vpop.f32.mrf.mxu0
    %v1978 = vadd.f32 %v1965, %v1977
    %v1979 = vpop.f32.mrf.mxu0
    %1980 = vdwg.mxu0
    %1981 = vmatpush.bf16.msra.mxu0 %v1722
    %1982 = vmatpush.bf16.msra.mxu0 %v1721
    %1983 = vmatpush.bf16.msra.mxu0 %v1720
    %1984 = vmatpush.bf16.msra.mxu0 %v1719
    %1985 = vmatpush.bf16.msra.mxu0 %v1718
    %1986 = vmatpush.bf16.msra.mxu0 %v1717
    %1987 = vmatpush.bf16.msra.mxu0 %v1716
    %1988 = vmatpush.bf16.msra.mxu0 %v1715
    %1989 = vmatmul.bf16.gmra.mxu0 %v854
    %v1990 = vpop.f32.mrf.mxu0
    %v1991 = vadd.f32 %v1978, %v1990
    %v1992 = vpop.f32.mrf.mxu0
    %1993 = vdwg.mxu0
    %1994 = vmatpush.bf16.msra.mxu0 %v1730
    %1995 = vmatpush.bf16.msra.mxu0 %v1729
    %1996 = vmatpush.bf16.msra.mxu0 %v1728
    %1997 = vmatpush.bf16.msra.mxu0 %v1727
    %1998 = vmatpush.bf16.msra.mxu0 %v1726
    %1999 = vmatpush.bf16.msra.mxu0 %v1725
    %2000 = vmatpush.bf16.msra.mxu0 %v1724
    %2001 = vmatpush.bf16.msra.mxu0 %v1723
    %2002 = vmatmul.bf16.gmra.mxu0 %v859
    %v2003 = vpop.f32.mrf.mxu0
    %v2004 = vadd.f32 %v1991, %v2003
    %v2005 = vpop.f32.mrf.mxu0
    %2006 = vdwg.mxu0
    %2007 = vmatpush.bf16.msra.mxu0 %v1738
    %2008 = vmatpush.bf16.msra.mxu0 %v1737
    %2009 = vmatpush.bf16.msra.mxu0 %v1736
    %2010 = vmatpush.bf16.msra.mxu0 %v1735
    %2011 = vmatpush.bf16.msra.mxu0 %v1734
    %2012 = vmatpush.bf16.msra.mxu0 %v1733
    %2013 = vmatpush.bf16.msra.mxu0 %v1732
    %2014 = vmatpush.bf16.msra.mxu0 %v1731
    %2015 = vmatmul.bf16.gmra.mxu0 %v864
    %v2016 = vpop.f32.mrf.mxu0
    %v2017 = vadd.f32 %v2004, %v2016
    %v2018 = vpop.f32.mrf.mxu0
    %2019 = vdwg.mxu0
    %2020 = vmatpush.bf16.msra.mxu0 %v1746
    %2021 = vmatpush.bf16.msra.mxu0 %v1745
    %2022 = vmatpush.bf16.msra.mxu0 %v1744
    %2023 = vmatpush.bf16.msra.mxu0 %v1743
    %2024 = vmatpush.bf16.msra.mxu0 %v1742
    %2025 = vmatpush.bf16.msra.mxu0 %v1741
    %2026 = vmatpush.bf16.msra.mxu0 %v1740
    %2027 = vmatpush.bf16.msra.mxu0 %v1739
    %2028 = vmatmul.bf16.gmra.mxu0 %v869
    %v2029 = vpop.f32.mrf.mxu0
    %v2030 = vadd.f32 %v2017, %v2029
    %v2031 = vpop.f32.mrf.mxu0
    %2032 = vdwg.mxu0
    %2033 = vmatpush.bf16.msra.mxu0 %v1754
    %2034 = vmatpush.bf16.msra.mxu0 %v1753
    %2035 = vmatpush.bf16.msra.mxu0 %v1752
    %2036 = vmatpush.bf16.msra.mxu0 %v1751
    %2037 = vmatpush.bf16.msra.mxu0 %v1750
    %2038 = vmatpush.bf16.msra.mxu0 %v1749
    %2039 = vmatpush.bf16.msra.mxu0 %v1748
    %2040 = vmatpush.bf16.msra.mxu0 %v1747
    %2041 = vmatmul.bf16.gmra.mxu0 %v874
    %v2042 = vpop.f32.mrf.mxu0
    %v2043 = vadd.f32 %v2030, %v2042
    %v2044 = vpop.f32.mrf.mxu0
    %2045 = vdwg.mxu0
    %2046 = vmatpush.bf16.msra.mxu0 %v1762
    %2047 = vmatpush.bf16.msra.mxu0 %v1761
    %2048 = vmatpush.bf16.msra.mxu0 %v1760
    %2049 = vmatpush.bf16.msra.mxu0 %v1759
    %2050 = vmatpush.bf16.msra.mxu0 %v1758
    %2051 = vmatpush.bf16.msra.mxu0 %v1757
    %2052 = vmatpush.bf16.msra.mxu0 %v1756
    %2053 = vmatpush.bf16.msra.mxu0 %v1755
    %2054 = vmatmul.bf16.gmra.mxu0 %v879
    %v2055 = vpop.f32.mrf.mxu0
    %v2056 = vadd.f32 %v2043, %v2055
    %v2057 = vpop.f32.mrf.mxu0
    %2058 = vdwg.mxu0
    %2059 = vmatpush.bf16.msra.mxu0 %v1770
    %2060 = vmatpush.bf16.msra.mxu0 %v1769
    %2061 = vmatpush.bf16.msra.mxu0 %v1768
    %2062 = vmatpush.bf16.msra.mxu0 %v1767
    %2063 = vmatpush.bf16.msra.mxu0 %v1766
    %2064 = vmatpush.bf16.msra.mxu0 %v1765
    %2065 = vmatpush.bf16.msra.mxu0 %v1764
    %2066 = vmatpush.bf16.msra.mxu0 %v1763
    %2067 = vmatmul.bf16.gmra.mxu0 %v891
    %v2068 = vpop.f32.mrf.mxu0
    %v2069 = vadd.f32 %v2056, %v2068
    %v2070 = vpop.f32.mrf.mxu0
    %2071 = vdwg.mxu0
    %2072 = vmatpush.bf16.msra.mxu0 %v1778
    %2073 = vmatpush.bf16.msra.mxu0 %v1777
    %2074 = vmatpush.bf16.msra.mxu0 %v1776
    %2075 = vmatpush.bf16.msra.mxu0 %v1775
    %2076 = vmatpush.bf16.msra.mxu0 %v1774
    %2077 = vmatpush.bf16.msra.mxu0 %v1773
    %2078 = vmatpush.bf16.msra.mxu0 %v1772
    %2079 = vmatpush.bf16.msra.mxu0 %v1771
    %2080 = vmatmul.bf16.gmra.mxu0 %v895
    %v2081 = vpop.f32.mrf.mxu0
    %v2082 = vadd.f32 %v2069, %v2081
    %v2083 = vpop.f32.mrf.mxu0
    %2084 = vdwg.mxu0
    %2085 = vmatpush.bf16.msra.mxu0 %v1786
    %2086 = vmatpush.bf16.msra.mxu0 %v1785
    %2087 = vmatpush.bf16.msra.mxu0 %v1784
    %2088 = vmatpush.bf16.msra.mxu0 %v1783
    %2089 = vmatpush.bf16.msra.mxu0 %v1782
    %2090 = vmatpush.bf16.msra.mxu0 %v1781
    %2091 = vmatpush.bf16.msra.mxu0 %v1780
    %2092 = vmatpush.bf16.msra.mxu0 %v1779
    %2093 = vmatmul.bf16.gmra.mxu0 %v900
    %v2094 = vpop.f32.mrf.mxu0
    %v2095 = vadd.f32 %v2082, %v2094
    %v2096 = vpop.f32.mrf.mxu0
    %2097 = vdwg.mxu0
    %2098 = vmatpush.bf16.msra.mxu0 %v1794
    %2099 = vmatpush.bf16.msra.mxu0 %v1793
    %2100 = vmatpush.bf16.msra.mxu0 %v1792
    %2101 = vmatpush.bf16.msra.mxu0 %v1791
    %2102 = vmatpush.bf16.msra.mxu0 %v1790
    %2103 = vmatpush.bf16.msra.mxu0 %v1789
    %2104 = vmatpush.bf16.msra.mxu0 %v1788
    %2105 = vmatpush.bf16.msra.mxu0 %v1787
    %2106 = vmatmul.bf16.gmra.mxu0 %v905
    %v2107 = vpop.f32.mrf.mxu0
    %v2108 = vadd.f32 %v2095, %v2107
    %v2109 = vpop.f32.mrf.mxu0
    %2110 = vdwg.mxu0
    %2111 = vmatpush.bf16.msra.mxu0 %v1802
    %2112 = vmatpush.bf16.msra.mxu0 %v1801
    %2113 = vmatpush.bf16.msra.mxu0 %v1800
    %2114 = vmatpush.bf16.msra.mxu0 %v1799
    %2115 = vmatpush.bf16.msra.mxu0 %v1798
    %2116 = vmatpush.bf16.msra.mxu0 %v1797
    %2117 = vmatpush.bf16.msra.mxu0 %v1796
    %2118 = vmatpush.bf16.msra.mxu0 %v1795
    %2119 = vmatmul.bf16.gmra.mxu0 %v910
    %v2120 = vpop.f32.mrf.mxu0
    %v2121 = vadd.f32 %v2108, %v2120
    %v2122 = vpop.f32.mrf.mxu0
    %2123 = vdwg.mxu0
    %2124 = vmatpush.bf16.msra.mxu0 %v1810
    %2125 = vmatpush.bf16.msra.mxu0 %v1809
    %2126 = vmatpush.bf16.msra.mxu0 %v1808
    %2127 = vmatpush.bf16.msra.mxu0 %v1807
    %2128 = vmatpush.bf16.msra.mxu0 %v1806
    %2129 = vmatpush.bf16.msra.mxu0 %v1805
    %2130 = vmatpush.bf16.msra.mxu0 %v1804
    %2131 = vmatpush.bf16.msra.mxu0 %v1803
    %2132 = vmatmul.bf16.gmra.mxu0 %v915
    %v2133 = vpop.f32.mrf.mxu0
    %v2134 = vadd.f32 %v2121, %v2133
    %v2135 = vpop.f32.mrf.mxu0
    %2136 = vdwg.mxu0
    %2137 = vmatpush.bf16.msra.mxu0 %v1818
    %2138 = vmatpush.bf16.msra.mxu0 %v1817
    %2139 = vmatpush.bf16.msra.mxu0 %v1816
    %2140 = vmatpush.bf16.msra.mxu0 %v1815
    %2141 = vmatpush.bf16.msra.mxu0 %v1814
    %2142 = vmatpush.bf16.msra.mxu0 %v1813
    %2143 = vmatpush.bf16.msra.mxu0 %v1812
    %2144 = vmatpush.bf16.msra.mxu0 %v1811
    %2145 = vmatmul.bf16.gmra.mxu0 %v920
    %v2146 = vpop.f32.mrf.mxu0
    %v2147 = vadd.f32 %v2134, %v2146
    %v2148 = vpop.f32.mrf.mxu0
    %2149 = vdwg.mxu0
    %2150 = vmatpush.bf16.msra.mxu0 %v1826
    %2151 = vmatpush.bf16.msra.mxu0 %v1825
    %2152 = vmatpush.bf16.msra.mxu0 %v1824
    %2153 = vmatpush.bf16.msra.mxu0 %v1823
    %2154 = vmatpush.bf16.msra.mxu0 %v1822
    %2155 = vmatpush.bf16.msra.mxu0 %v1821
    %2156 = vmatpush.bf16.msra.mxu0 %v1820
    %2157 = vmatpush.bf16.msra.mxu0 %v1819
    %2158 = vmatmul.bf16.gmra.mxu0 %v925
    %v2159 = vpop.f32.mrf.mxu0
    %v2160 = vadd.f32 %v2147, %v2159
    %v2161 = vpop.f32.mrf.mxu0
    %2162 = vdwg.mxu0
    %v2163 = vmax.f32 %v2160, 0.0
    %v2164 = vpack.c.bf16 %v2163, %v2163
    %v2165 = vld [vmem:[%s7] sm:$0xf]
    %v2166 = vld [vmem:[%s7 + $0x4] sm:$0xf]
    %v2167 = vld [vmem:[%s7 + $0x8] sm:$0xf]
    %v2168 = vld [vmem:[%s7 + $0xc] sm:$0xf]
    %v2169 = vld [vmem:[%s7 + $0x10] sm:$0xf]
    %v2170 = vld [vmem:[%s7 + $0x14] sm:$0xf]
    %v2171 = vld [vmem:[%s7 + $0x18] sm:$0xf]
    %v2172 = vld [vmem:[%s7 + $0x1c] sm:$0xf]
    %v2173 = vld [vmem:[%s7 + $0x20] sm:$0xf]
    %v2174 = vld [vmem:[%s7 + $0x24] sm:$0xf]
    %v2175 = vld [vmem:[%s7 + $0x28] sm:$0xf]
    %v2176 = vld [vmem:[%s7 + $0x2c] sm:$0xf]
    %v2177 = vld [vmem:[%s7 + $0x30] sm:$0xf]
    %v2178 = vld [vmem:[%s7 + $0x34] sm:$0xf]
    %v2179 = vld [vmem:[%s7 + $0x38] sm:$0xf]
    %v2180 = vld [vmem:[%s7 + $0x3c] sm:$0xf]
    %v2181 = vld [vmem:[%s8] sm:$0x1]
    %v2183 = vperm.slane %v2181, 0
    %v2201 = vunpack.c.l.b16 %v2165
    %v2202 = vunpack.c.l.b16 %v2166
    %v2203 = vunpack.c.l.b16 %v2167
    %v2204 = vunpack.c.l.b16 %v2168
    %v2205 = vunpack.c.l.b16 %v2169
    %v2206 = vunpack.c.l.b16 %v2170
    %v2207 = vunpack.c.l.b16 %v2171
    %v2208 = vunpack.c.l.b16 %v2172
    %v2209 = vunpack.c.l.b16 %v2173
    %v2210 = vunpack.c.l.b16 %v2174
    %v2211 = vunpack.c.l.b16 %v2175
    %v2212 = vunpack.c.l.b16 %v2176
    %v2213 = vunpack.c.l.b16 %v2177
    %v2214 = vunpack.c.l.b16 %v2178
    %v2215 = vunpack.c.l.b16 %v2179
    %v2216 = vunpack.c.l.b16 %v2180
    %v2217 = vpack.c.b16 %v2202, %v2201
    %v2218 = vpack.c.b16 %v2204, %v2203
    %v2219 = vpack.c.b16 %v2206, %v2205
    %v2220 = vpack.c.b16 %v2208, %v2207
    %v2221 = vpack.c.b16 %v2210, %v2209
    %v2222 = vpack.c.b16 %v2212, %v2211
    %v2223 = vpack.c.b16 %v2214, %v2213
    %v2224 = vpack.c.b16 %v2216, %v2215
    %2233 = vmatpush.bf16.msra.mxu0 %v2224
    %2234 = vmatpush.bf16.msra.mxu0 %v2223
    %2235 = vmatpush.bf16.msra.mxu0 %v2222
    %2236 = vmatpush.bf16.msra.mxu0 %v2221
    %2237 = vmatpush.bf16.msra.mxu0 %v2220
    %2238 = vmatpush.bf16.msra.mxu0 %v2219
    %2239 = vmatpush.bf16.msra.mxu0 %v2218
    %2240 = vmatpush.bf16.msra.mxu0 %v2217
    %2241 = vmatmul.bf16.gmra.mxu0 %v2164
    %v2242 = vpop.f32.mrf.mxu0
    %v2243 = vadd.f32 %v2183, %v2242
    %v2244 = vpop.f32.mrf.mxu0
    %2245 = vdwg.mxu0
    %2246 = vst [vmem:[#allocation6] sm:$0x3] %v2243
    // Predicated region
    $region42: #{_fused_forward.1} parent=1 // pred_check
      _
    $region43: #{_fused_forward.1} parent=1 // pred_check_branch
      %2248 = sbr.rel (0) target = $region45
    $region44: #{_fused_forward.1} parent=1 // pred_region
      %2250 = vsyncadd [#allocation5], 0
      %s2252 = sshll.u32 [#allocation6], 4
      %s2253 = int_to_ptr.vmem [resolvable:$true] %s2252
      %s2254 = sshll.u32 %s9, 4
      %s2255 = int_to_ptr.hbm [resolvable:$true] %s2254
      %2257 = dma.vmem_to_hbm [thread:$0]  %s2253, 32, %s2255, [#allocation5]
    $region45: #{_fused_forward.1} parent=1 // pred_fallthru
      _
    // Predicated region
    $region46: #{_fused_forward.1} parent=1 // pred_check
      _
    $region47: #{_fused_forward.1} parent=1 // pred_check_branch
      %2259 = sbr.rel (0) target = $region49
    $region48: #{_fused_forward.1} parent=1 // pred_region
      %2261 = dma.done [#allocation5], 32
    $region49: #{_fused_forward.1} parent=1 // pred_fallthru
      _
    %2262 = vsyncpa [#allocation4], 1
    %2263 = vsyncpa [#allocation5], 1

</llo_original>
